<compile_context>
chip_gen: v6e
topology: v6e:2x2x1
jax: 0.10.0
libtpu: 0.0.40
codegen_flags: <defaults>
</compile_context>

<pallas_src>
import functools

import numpy as np
import jax
import jax.numpy as jnp
from jax import lax
from jax.experimental import pallas as pl
from jax.experimental.pallas import tpu as pltpu

_NEG = -1.0e30  # large-negative stand-in for -inf; keeps all lane math finite


# --------------------------------------------------------------------------------
# One-time host-side probes (cached): roll convention + physical VMEM size.
# --------------------------------------------------------------------------------
@functools.lru_cache(maxsize=1)
def _roll_is_forward() -> bool:
    """True iff pltpu.roll(x, s, axis)[..., i] == x[..., i - s] (np.roll convention)."""
    def _probe(o_ref):
        o_ref[...] = pltpu.roll(
            lax.broadcasted_iota(jnp.float32, (8, 128), 1), 1, axis=1)
    try:
        out = pl.pallas_call(
            _probe, out_shape=jax.ShapeDtypeStruct((8, 128), jnp.float32))()
        return bool(np.asarray(out)[0, 1] == 0.0)
    except Exception:
        return True


@functools.lru_cache(maxsize=1)
def _physical_vmem_bytes() -> int:
    try:
        info = pltpu.get_tpu_info()
        v = int(getattr(info, "vmem_capacity_bytes", 0) or 0)
        if v > 0:
            return v
    except Exception:
        pass
    return 64 * 2 ** 20  # conservative fallback (smallest across v5e/v6e/v7x)


def _auto_t_tile(U, V, itemsize):
    vmem_phys = max(_physical_vmem_bytes(), 32 * 2 ** 20)
    # ~1/12 of physical VMEM per activation slab (double-buffered by the pipeline
    # plus a few slab-sized f32 temporaries): ~10 MiB on 128-MiB parts (v5e/v6e),
    # ~5 MiB on 64-MiB parts (v7x).
    slab_target = min(12 << 20, max(2 << 20, vmem_phys // 12))
    return max(1, int(slab_target) // max(1, U * V * itemsize))


# --------------------------------------------------------------------------------
# Kernel
# --------------------------------------------------------------------------------
def _rnnt_loss_kernel(flen_ref, glen_ref,        # scalar prefetch (SMEM): [B] int32 each
                      acts_ref, labels_ref,      # VMEM: (1,Tt,U,V), (1,U,1) int32
                      cost_ref,                  # VMEM out: (1,1,1) f32
                      lpb_ref, lpl_ref,          # VMEM scratch: (T_scr, u_pad) f32
                      *, blank, fastemit_lambda, t_max, roll_forward):
    b = pl.program_id(0)
    ti = pl.program_id(1)
    n_ti = pl.num_programs(1)
    _, t_tile, U, V = acts_ref.shape
    _t_scr, u_pad = lpb_ref.shape

    # -------- streaming phase: log-normalizer + blank/label gathers for this slab --
    acts = acts_ref[0].astype(jnp.float32)                    # (Tt, U, V)
    m_k = jnp.max(acts, axis=-1, keepdims=True)               # (Tt, U, 1) for exp
    ez = jnp.exp(acts - m_k)                                  # (Tt, U, V)
    if V >= 256:
        # Offload the wide lane reduction to the (otherwise idle) MXU; the 2-D
        # reshape lets it lower as one clean matmul.
        ones_v = jnp.ones((V, 1), jnp.float32)
        se = jnp.dot(ez.reshape(t_tile * U, V), ones_v,
                     preferred_element_type=jnp.float32).reshape(t_tile, U)
    else:
        se = jnp.sum(ez, axis=-1)                             # (Tt, U)
    m_s = jnp.max(acts, axis=-1)                              # (Tt, U)
    logz = m_s + jnp.log(se)                                  # (Tt, U) log-normalizer

    # Gather the RAW activations (not a materialized log-softmax) at the blank /
    # label positions, then subtract logZ from the two small (Tt, U) tables.
    v_iota = lax.broadcasted_iota(jnp.int32, (U, V), 1)       # (U, V)
    lab = labels_ref[0]                                       # (U, 1) int32 (padded)
    blank_mask = v_iota == blank                              # (U, V)
    label_mask = v_iota == lab                                # (U, V)
    a_blank = jnp.sum(jnp.where(blank_mask[None], acts, 0.0), axis=-1)   # (Tt, U)
    a_label = jnp.sum(jnp.where(label_mask[None], acts, 0.0), axis=-1)   # (Tt, U)
    lp_blank = a_blank - logz                                 # (Tt, U)
    lp_label = a_label - logz                                 # (Tt, U)

    # Widen to the full 128-lane scratch width (zero pad lanes) with a tiny MXU
    # selection matmul so the stores below are unmasked, lane-dense vst's.  Pad
    # lanes only ever feed pad lanes in the DP below, so no memset is needed.
    if u_pad != U:
        sel = (lax.broadcasted_iota(jnp.int32, (U, u_pad), 0) ==
               lax.broadcasted_iota(jnp.int32, (U, u_pad), 1)).astype(jnp.float32)
        lp_blank = jnp.dot(lp_blank, sel, preferred_element_type=jnp.float32)
        lp_label = jnp.dot(lp_label, sel, preferred_element_type=jnp.float32)

    if t_tile % 8 == 0:
        t0 = pl.multiple_of(ti * t_tile, 8)                   # aligned sublane offset
    else:
        t0 = ti * t_tile
    lpb_ref[pl.ds(t0, t_tile), :] = lp_blank
    lpl_ref[pl.ds(t0, t_tile), :] = lp_label

    # -------- DP phase: run once per batch row, after its last T slab --------------
    @pl.when(ti == n_ti - 1)
    def _alpha_dp():
        # Clamp lengths to [1, T] / [1, U] so scratch rows/lanes past the real
        # data (which may hold boundary-padded garbage) are never read.
        T_b = jnp.minimum(jnp.maximum(flen_ref[b], 1), t_max)
        U_b = jnp.minimum(jnp.maximum(glen_ref[b] + 1, 1), U)

        u_iota = lax.broadcasted_iota(jnp.int32, (1, u_pad), 1)

        def shift_right(x, d):
            # out[u] = x[u - d]; wrapped low lanes are masked off by callers.
            amt = d if roll_forward else (u_pad - d)
            return pltpu.roll(x, amt, axis=1)

        shifts = []
        d = 1
        while d < U:
            shifts.append(d)
            d *= 2

        # alphas[0, :]  =  exclusive prefix sum of lp_label[0, :]
        e0 = lpl_ref[pl.ds(0, 1), :]                          # (1, u_pad)
        s = jnp.where(u_iota >= 1, shift_right(e0, 1), 0.0)
        for d in shifts:
            s = s + jnp.where(u_iota >= d, shift_right(s, d), 0.0)
        alpha0 = s

        # rows t = 1 .. T_b-1:  new[u] = logaddexp(prev[u] + lpb[t-1,u],
        #                                          new[u-1] + lpl[t,u-1])
        # solved per row with a log2(U) associative lane scan in the
        # (logaddexp, +) semiring; one XLU roll per scan step.
        def t_body(t, prev_alpha):
            bl = lpb_ref[pl.ds(t - 1, 1), :]                  # lp_blank[t-1, :]
            em = lpl_ref[pl.ds(t, 1), :]                      # lp_label[t,   :]
            bvec = prev_alpha + bl                            # "no-emit" candidates
            avec = jnp.where(u_iota >= 1, shift_right(em, 1), _NEG)
            for i, d in enumerate(shifts):
                mask = u_iota >= d
                bvec = jnp.where(mask,
                                 jnp.logaddexp(avec + shift_right(bvec, d), bvec),
                                 bvec)
                if i + 1 < len(shifts):
                    avec = jnp.where(mask, avec + shift_right(avec, d), avec)
            return bvec

        final_alpha = lax.fori_loop(1, T_b, t_body, alpha0)   # alphas[T_b-1, :]

        def pick(vec, idx):                                   # vec[0, idx] as (1, 1)
            return jnp.sum(jnp.where(u_iota == idx, vec, 0.0), keepdims=True)

        last_blank = lpb_ref[pl.ds(T_b - 1, 1), :]
        loglike = pick(final_alpha, U_b - 1) + pick(last_blank, U_b - 1)
        # NeMo forward value: cost = -ll_forward + fastemit_reg = -(1+lambda)*ll_forward
        cost_ref[0] = (-(1.0 + fastemit_lambda) * loglike).astype(jnp.float32)


# --------------------------------------------------------------------------------
# Wrapper
# --------------------------------------------------------------------------------
def rnnt_loss(acts, labels, act_lens, label_lens, *, blank=0, fastemit_lambda=0.0,
              t_tile=None):
    """acts: [B,T,U,V] float; labels: [B,U-1] int; act_lens/label_lens: [B] int.
    Returns a shape-[1] float32 array = sum over batch of per-utterance RNNT losses."""
    B, T, U, V = acts.shape
    # pad labels with a blank column so the kernel can index u in [0, U-1]
    labels_pad = jnp.concatenate(
        [labels.astype(jnp.int32), jnp.full((B, 1), blank, jnp.int32)], axis=1)
    labels_pad = labels_pad.reshape(B, U, 1)
    flen = act_lens.astype(jnp.int32)
    glen = label_lens.astype(jnp.int32)

    itemsize = acts.dtype.itemsize
    if t_tile is None:
        t_tile = _auto_t_tile(U, V, itemsize)
    t_tile = int(max(1, min(int(t_tile), T)))
    if t_tile >= 8:
        t_tile = (t_tile // 8) * 8            # keep slabs sublane (8-row) aligned
    n_t = pl.cdiv(T, t_tile)
    u_pad = 128 * ((U + 127) // 128)
    t_scr = n_t * t_tile

    # VMEM budget: double-buffered acts slab + ~3 slab-sized f32 temporaries
    # (acts_f32, exp, intermediates) + the persistent lpb/lpl tables + headroom,
    # capped below the detected physical VMEM (64 MiB on v7x, 128 MiB on v5e/v6e).
    vmem_phys = max(_physical_vmem_bytes(), 32 * 2 ** 20)
    slab_bytes = t_tile * U * V * itemsize
    scratch_bytes = 2 * t_scr * u_pad * 4
    need = 2 * slab_bytes + 3 * t_tile * U * V * 4 + scratch_bytes + (2 << 20)
    vmem_limit = int(min(max(need, 16 << 20), vmem_phys - (8 << 20)))

    kernel = functools.partial(_rnnt_loss_kernel,
                               blank=blank, fastemit_lambda=fastemit_lambda,
                               t_max=T, roll_forward=_roll_is_forward())
    costs = pl.pallas_call(
        kernel,
        out_shape=jax.ShapeDtypeStruct((B, 1, 1), jnp.float32),
        grid_spec=pltpu.PrefetchScalarGridSpec(
            num_scalar_prefetch=2,
            grid=(B, n_t),
            in_specs=[
                pl.BlockSpec((1, t_tile, U, V), lambda b, ti, fl, gl: (b, ti, 0, 0)),
                pl.BlockSpec((1, U, 1), lambda b, ti, fl, gl: (b, 0, 0)),
            ],
            out_specs=pl.BlockSpec((1, 1, 1), lambda b, ti, fl, gl: (b, 0, 0)),
            scratch_shapes=[pltpu.VMEM((t_scr, u_pad), jnp.float32),
                            pltpu.VMEM((t_scr, u_pad), jnp.float32)],
        ),
        compiler_params=pltpu.CompilerParams(
            dimension_semantics=("parallel", "arbitrary"),
            vmem_limit_bytes=vmem_limit),
    )(flen, glen, acts, labels_pad)
    return jnp.sum(costs).reshape(1)


class RNNTLoss:
    """Mirror of the PyTorch module's forward (loss value only)."""

    def __init__(self, blank: int = 0, fastemit_lambda: float = 0.0, clamp: float = -1.0):
        self.blank = blank
        self.fastemit_lambda = fastemit_lambda
        self.clamp = float(clamp) if clamp > 0 else 0.0  # clamp only affects backward

    def __call__(self, acts, labels, act_lens, label_lens):
        return rnnt_loss(acts, labels, act_lens, label_lens,
                         blank=self.blank, fastemit_lambda=self.fastemit_lambda)


# ----------------------- pure-numpy reference (for checking) -----------------------
def _reference_loss(acts, labels, flen, glen, blank=0, fastemit_lambda=0.0):
    acts = np.asarray(acts, np.float32)
    m = acts.max(-1, keepdims=True)
    lp_all = acts - m - np.log(np.exp(acts - m).sum(-1, keepdims=True))
    total = np.float32(0.0)
    for b in range(acts.shape[0]):
        t = int(flen[b]); u = int(glen[b]) + 1
        lp = lp_all[b, :t, :u, :]
        lab = np.asarray(labels[b][: u - 1])
        alphas = np.zeros((t, u), np.float32)
        for ti in range(1, t):
            alphas[ti, 0] = alphas[ti - 1, 0] + lp[ti - 1, 0, blank]
        for ui in range(1, u):
            alphas[0, ui] = alphas[0, ui - 1] + lp[0, ui - 1, lab[ui - 1]]
        for ti in range(1, t):
            for ui in range(1, u):
                no_emit = alphas[ti - 1, ui] + lp[ti - 1, ui, blank]
                emit = alphas[ti, ui - 1] + lp[ti, ui - 1, lab[ui - 1]]
                alphas[ti, ui] = np.logaddexp(emit, no_emit)
        ll = alphas[t - 1, u - 1] + lp[t - 1, u - 1, blank]
        total += -(1.0 + fastemit_lambda) * ll
    return np.array([total], np.float32)


if __name__ == "__main__":
    key = jax.random.PRNGKey(0)
    B, T, U, V = 2, 24, 5, 8          # U = max label len + 1, V = vocab size + blank
    k1, k2 = jax.random.split(key)
    acts = jax.random.normal(k1, (B, T, U, V), jnp.float32)
    labels = jax.random.randint(k2, (B, U - 1), 1, V)          # labels in [1, V-1]
    act_lens = jnp.array([T, T - 5], jnp.int32)
    label_lens = jnp.array([U - 1, U - 2], jnp.int32)

    ref = _reference_loss(np.asarray(acts), np.asarray(labels),
                          np.asarray(act_lens), np.asarray(label_lens), blank=0)

    # default (auto) tiling: single T slab at these small shapes
    loss_fn = RNNTLoss(blank=0, fastemit_lambda=0.0)
    loss_a = jax.block_until_ready(loss_fn(acts, labels, act_lens, label_lens))
    assert np.allclose(np.asarray(loss_a), ref, rtol=1e-4, atol=5e-3), (loss_a, ref)

    # forced multi-slab streaming path (three T slabs of 8 rows)
    loss_b = jax.block_until_ready(
        rnnt_loss(acts, labels, act_lens, label_lens,
                  blank=0, fastemit_lambda=0.0, t_tile=8))
    assert np.allclose(np.asarray(loss_b), ref, rtol=1e-4, atol=5e-3), (loss_b, ref)

    print("KERNEL_OK")
</pallas_src>

<mosaic_0001>
module attributes {stable_mosaic.version = 11 : i64} {
  func.func @_rnnt_loss_kernel(%arg0: i32, %arg1: i32, %arg2: memref<2xi32, #tpu.memory_space<smem>>, %arg3: memref<2xi32, #tpu.memory_space<smem>>, %arg4: memref<1x24x5x8xf32, #tpu.memory_space<vmem>>, %arg5: memref<1x5x1xi32, #tpu.memory_space<vmem>>, %arg6: memref<1x1x1xf32, #tpu.memory_space<vmem>>, %arg7: memref<24x128xf32, #tpu.memory_space<vmem>>, %arg8: memref<24x128xf32, #tpu.memory_space<vmem>>) attributes {dimension_semantics = [#tpu.dimension_semantics<parallel>, #tpu.dimension_semantics<arbitrary>], iteration_bounds = array<i64: 2, 1>, scalar_prefetch = 2 : i64, scratch_operands = 2 : i64, tpu.core_type = #tpu.core_type<tc>, window_params = [{transform_indices = @transform_0, window_bounds = array<i64: 1, 24, 5, 8>}, {transform_indices = @transform_1, window_bounds = array<i64: 1, 5, 1>}, {transform_indices = @transform_2, window_bounds = array<i64: 1, 1, 1>}]} {
    %c0 = arith.constant 0 : index
    %c0_0 = arith.constant 0 : index
    %c0_1 = arith.constant 0 : index
    %c0_2 = arith.constant 0 : index
    %0 = vector.load %arg4[%c0, %c0_0, %c0_1, %c0_2] : memref<1x24x5x8xf32, #tpu.memory_space<vmem>>, vector<1x24x5x8xf32>
    %1 = vector.shape_cast %0 : vector<1x24x5x8xf32> to vector<24x5x8xf32>
    %cst = arith.constant dense<0xFF800000> : vector<24x5xf32>
    %2 = vector.multi_reduction <maximumf>, %1, %cst [2] : vector<24x5x8xf32> to vector<24x5xf32>
    %3 = vector.shape_cast %2 : vector<24x5xf32> to vector<24x5x1xf32>
    %4 = vector.broadcast %3 : vector<24x5x1xf32> to vector<24x5x8xf32>
    %5 = arith.subf %1, %4 : vector<24x5x8xf32>
    %6 = math.exp %5 : vector<24x5x8xf32>
    %cst_3 = arith.constant dense<0.000000e+00> : vector<24x5xf32>
    %7 = vector.multi_reduction <add>, %6, %cst_3 [2] : vector<24x5x8xf32> to vector<24x5xf32>
    %cst_4 = arith.constant dense<0xFF800000> : vector<24x5xf32>
    %8 = vector.multi_reduction <maximumf>, %1, %cst_4 [2] : vector<24x5x8xf32> to vector<24x5xf32>
    %9 = math.log %7 : vector<24x5xf32>
    %10 = arith.addf %8, %9 : vector<24x5xf32>
    %11 = tpu.iota {dimensions = array<i32: 1>} : vector<5x8xi32>
    %c0_5 = arith.constant 0 : index
    %c0_6 = arith.constant 0 : index
    %c0_7 = arith.constant 0 : index
    %12 = vector.load %arg5[%c0_5, %c0_6, %c0_7] : memref<1x5x1xi32, #tpu.memory_space<vmem>>, vector<1x5x1xi32>
    %13 = vector.shape_cast %12 : vector<1x5x1xi32> to vector<5x1xi32>
    %c0_i32 = arith.constant 0 : i32
    %14 = vector.broadcast %c0_i32 : i32 to vector<5x8xi32>
    %15 = arith.cmpi eq, %11, %14 : vector<5x8xi32>
    %16 = vector.broadcast %13 : vector<5x1xi32> to vector<5x8xi32>
    %17 = arith.cmpi eq, %11, %16 : vector<5x8xi32>
    %18 = vector.shape_cast %15 : vector<5x8xi1> to vector<1x5x8xi1>
    %cst_8 = arith.constant 0.000000e+00 : f32
    %19 = vector.shape_cast %18 : vector<1x5x8xi1> to vector<1x5x8xi1>
    %20 = vector.broadcast %19 : vector<1x5x8xi1> to vector<24x5x8xi1>
    %21 = vector.broadcast %cst_8 : f32 to vector<24x5x8xf32>
    %22 = arith.select %20, %1, %21 : vector<24x5x8xi1>, vector<24x5x8xf32>
    %cst_9 = arith.constant dense<0.000000e+00> : vector<24x5xf32>
    %23 = vector.multi_reduction <add>, %22, %cst_9 [2] : vector<24x5x8xf32> to vector<24x5xf32>
    %24 = vector.shape_cast %17 : vector<5x8xi1> to vector<1x5x8xi1>
    %cst_10 = arith.constant 0.000000e+00 : f32
    %25 = vector.shape_cast %24 : vector<1x5x8xi1> to vector<1x5x8xi1>
    %26 = vector.broadcast %25 : vector<1x5x8xi1> to vector<24x5x8xi1>
    %27 = vector.broadcast %cst_10 : f32 to vector<24x5x8xf32>
    %28 = arith.select %26, %1, %27 : vector<24x5x8xi1>, vector<24x5x8xf32>
    %cst_11 = arith.constant dense<0.000000e+00> : vector<24x5xf32>
    %29 = vector.multi_reduction <add>, %28, %cst_11 [2] : vector<24x5x8xf32> to vector<24x5xf32>
    %30 = arith.subf %23, %10 : vector<24x5xf32>
    %31 = arith.subf %29, %10 : vector<24x5xf32>
    %32 = tpu.iota {dimensions = array<i32: 0>} : vector<5x128xi32>
    %33 = tpu.iota {dimensions = array<i32: 1>} : vector<5x128xi32>
    %34 = arith.cmpi eq, %32, %33 : vector<5x128xi32>
    %35 = arith.extui %34 : vector<5x128xi1> to vector<5x128xi32>
    %36 = arith.sitofp %35 : vector<5x128xi32> to vector<5x128xf32>
    %cst_12 = arith.constant dense<0.000000e+00> : vector<24x128xf32>
    %37 = tpu.matmul %30, %36, %cst_12 {dimension_numbers = #tpu.dot_dimension_numbers<[1], [0], [0], [1], [0, 0, 1, 1], [], []>} : vector<24x5xf32>, vector<5x128xf32>, vector<24x128xf32> -> vector<24x128xf32>
    %cst_13 = arith.constant dense<0.000000e+00> : vector<24x128xf32>
    %38 = tpu.matmul %31, %36, %cst_13 {dimension_numbers = #tpu.dot_dimension_numbers<[1], [0], [0], [1], [0, 0, 1, 1], [], []>} : vector<24x5xf32>, vector<5x128xf32>, vector<24x128xf32> -> vector<24x128xf32>
    %c24_i32 = arith.constant 24 : i32
    %39 = arith.muli %arg1, %c24_i32 : i32
    %40 = tpu.assume_multiple %39, 8 : i32
    %41 = arith.index_cast %40 : i32 to index
    %c0_14 = arith.constant 0 : index
    %42 = vector.load %arg7[%41, %c0_14] : memref<24x128xf32, #tpu.memory_space<vmem>>, vector<24x128xf32>
    tpu.vector_store %arg7[%41, %c0_14], %37 {strides = array<i32>} : memref<24x128xf32, #tpu.memory_space<vmem>>, vector<24x128xf32>,
    %43 = arith.index_cast %40 : i32 to index
    %c0_15 = arith.constant 0 : index
    %44 = vector.load %arg8[%43, %c0_15] : memref<24x128xf32, #tpu.memory_space<vmem>>, vector<24x128xf32>
    tpu.vector_store %arg8[%43, %c0_15], %38 {strides = array<i32>} : memref<24x128xf32, #tpu.memory_space<vmem>>, vector<24x128xf32>,
    %c0_i32_16 = arith.constant 0 : i32
    %45 = arith.cmpi eq, %arg1, %c0_i32_16 : i32
    %46 = arith.extui %45 : i1 to i32
    %c0_i32_17 = arith.constant 0 : i32
    %47 = arith.cmpi ne, %46, %c0_i32_17 : i32
    scf.if %47 {
      %48 = arith.index_cast %arg0 : i32 to index
      %49 = memref.load %arg2[%48] : memref<2xi32, #tpu.memory_space<smem>>
      %c1_i32 = arith.constant 1 : i32
      %50 = arith.maxsi %49, %c1_i32 : i32
      %c24_i32_18 = arith.constant 24 : i32
      %51 = arith.minsi %50, %c24_i32_18 : i32
      %52 = arith.index_cast %arg0 : i32 to index
      %53 = memref.load %arg3[%52] : memref<2xi32, #tpu.memory_space<smem>>
      %c1_i32_19 = arith.constant 1 : i32
      %54 = arith.addi %53, %c1_i32_19 : i32
      %c1_i32_20 = arith.constant 1 : i32
      %55 = arith.maxsi %54, %c1_i32_20 : i32
      %c5_i32 = arith.constant 5 : i32
      %56 = arith.minsi %55, %c5_i32 : i32
      %57 = tpu.iota {dimensions = array<i32: 1>} : vector<1x128xi32>
      %c0_21 = arith.constant 0 : index
      %c0_22 = arith.constant 0 : index
      %58 = vector.load %arg8[%c0_21, %c0_22] : memref<24x128xf32, #tpu.memory_space<vmem>>, vector<1x128xf32>
      %c1_i32_23 = arith.constant 1 : i32
      %59 = vector.broadcast %c1_i32_23 : i32 to vector<1x128xi32>
      %60 = arith.cmpi sge, %57, %59 : vector<1x128xi32>
      %c1_i32_24 = arith.constant 1 : i32
      %61 = tpu.dynamic_rotate %58 by %c1_i32_24 dim 1 : vector<1x128xf32>, i32 -> vector<1x128xf32>
      %cst_25 = arith.constant 0.000000e+00 : f32
      %62 = vector.broadcast %cst_25 : f32 to vector<1x128xf32>
      %63 = arith.select %60, %61, %62 : vector<1x128xi1>, vector<1x128xf32>
      %c1_i32_26 = arith.constant 1 : i32
      %64 = vector.broadcast %c1_i32_26 : i32 to vector<1x128xi32>
      %65 = arith.cmpi sge, %57, %64 : vector<1x128xi32>
      %c1_i32_27 = arith.constant 1 : i32
      %66 = tpu.dynamic_rotate %63 by %c1_i32_27 dim 1 : vector<1x128xf32>, i32 -> vector<1x128xf32>
      %cst_28 = arith.constant 0.000000e+00 : f32
      %67 = vector.broadcast %cst_28 : f32 to vector<1x128xf32>
      %68 = arith.select %65, %66, %67 : vector<1x128xi1>, vector<1x128xf32>
      %69 = arith.addf %63, %68 : vector<1x128xf32>
      %c2_i32 = arith.constant 2 : i32
      %70 = vector.broadcast %c2_i32 : i32 to vector<1x128xi32>
      %71 = arith.cmpi sge, %57, %70 : vector<1x128xi32>
      %c2_i32_29 = arith.constant 2 : i32
      %72 = tpu.dynamic_rotate %69 by %c2_i32_29 dim 1 : vector<1x128xf32>, i32 -> vector<1x128xf32>
      %cst_30 = arith.constant 0.000000e+00 : f32
      %73 = vector.broadcast %cst_30 : f32 to vector<1x128xf32>
      %74 = arith.select %71, %72, %73 : vector<1x128xi1>, vector<1x128xf32>
      %75 = arith.addf %69, %74 : vector<1x128xf32>
      %c4_i32 = arith.constant 4 : i32
      %76 = vector.broadcast %c4_i32 : i32 to vector<1x128xi32>
      %77 = arith.cmpi sge, %57, %76 : vector<1x128xi32>
      %c4_i32_31 = arith.constant 4 : i32
      %78 = tpu.dynamic_rotate %75 by %c4_i32_31 dim 1 : vector<1x128xf32>, i32 -> vector<1x128xf32>
      %cst_32 = arith.constant 0.000000e+00 : f32
      %79 = vector.broadcast %cst_32 : f32 to vector<1x128xf32>
      %80 = arith.select %77, %78, %79 : vector<1x128xi1>, vector<1x128xf32>
      %81 = arith.addf %75, %80 : vector<1x128xf32>
      %c1_i32_33 = arith.constant 1 : i32
      %82 = arith.subi %51, %c1_i32_33 : i32
      %83 = arith.addi %c1_i32_33, %82 : i32
      %c1_i32_34 = arith.constant 1 : i32
      %84 = scf.for %arg9 = %c1_i32_33 to %83 step %c1_i32_34 iter_args(%arg10 = %81) -> (vector<1x128xf32>)  : i32 {
        %c1_i32_47 = arith.constant 1 : i32
        %114 = arith.subi %arg9, %c1_i32_47 : i32
        %115 = arith.index_cast %114 : i32 to index
        %c0_48 = arith.constant 0 : index
        %116 = vector.load %arg7[%115, %c0_48] : memref<24x128xf32, #tpu.memory_space<vmem>>, vector<1x128xf32>
        %117 = arith.index_cast %arg9 : i32 to index
        %c0_49 = arith.constant 0 : index
        %118 = vector.load %arg8[%117, %c0_49] : memref<24x128xf32, #tpu.memory_space<vmem>>, vector<1x128xf32>
        %119 = arith.addf %arg10, %116 : vector<1x128xf32>
        %c1_i32_50 = arith.constant 1 : i32
        %120 = vector.broadcast %c1_i32_50 : i32 to vector<1x128xi32>
        %121 = arith.cmpi sge, %57, %120 : vector<1x128xi32>
        %c1_i32_51 = arith.constant 1 : i32
        %122 = tpu.dynamic_rotate %118 by %c1_i32_51 dim 1 : vector<1x128xf32>, i32 -> vector<1x128xf32>
        %cst_52 = arith.constant -1.000000e+30 : f32
        %123 = vector.broadcast %cst_52 : f32 to vector<1x128xf32>
        %124 = arith.select %121, %122, %123 : vector<1x128xi1>, vector<1x128xf32>
        %c1_i32_53 = arith.constant 1 : i32
        %125 = vector.broadcast %c1_i32_53 : i32 to vector<1x128xi32>
        %126 = arith.cmpi sge, %57, %125 : vector<1x128xi32>
        %c1_i32_54 = arith.constant 1 : i32
        %127 = tpu.dynamic_rotate %119 by %c1_i32_54 dim 1 : vector<1x128xf32>, i32 -> vector<1x128xf32>
        %128 = arith.addf %124, %127 : vector<1x128xf32>
        %129 = arith.maximumf %128, %119 : vector<1x128xf32>
        %130 = arith.subf %128, %119 : vector<1x128xf32>
        %131 = arith.cmpf one, %130, %130 : vector<1x128xf32>
        %132 = arith.addf %128, %119 : vector<1x128xf32>
        %133 = math.absf %130 : vector<1x128xf32>
        %cst_55 = arith.constant 0.000000e+00 : f32
        %134 = vector.broadcast %cst_55 : f32 to vector<1x128xf32>
        %135 = arith.subf %134, %133 : vector<1x128xf32>
        %136 = math.exp %135 : vector<1x128xf32>
        %137 = math.log1p %136 : vector<1x128xf32>
        %138 = arith.addf %129, %137 : vector<1x128xf32>
        %139 = arith.select %131, %132, %138 : vector<1x128xi1>, vector<1x128xf32>
        %140 = arith.select %126, %139, %119 : vector<1x128xi1>, vector<1x128xf32>
        %c1_i32_56 = arith.constant 1 : i32
        %141 = tpu.dynamic_rotate %124 by %c1_i32_56 dim 1 : vector<1x128xf32>, i32 -> vector<1x128xf32>
        %142 = arith.addf %124, %141 : vector<1x128xf32>
        %143 = arith.select %126, %142, %124 : vector<1x128xi1>, vector<1x128xf32>
        %c2_i32_57 = arith.constant 2 : i32
        %144 = vector.broadcast %c2_i32_57 : i32 to vector<1x128xi32>
        %145 = arith.cmpi sge, %57, %144 : vector<1x128xi32>
        %c2_i32_58 = arith.constant 2 : i32
        %146 = tpu.dynamic_rotate %140 by %c2_i32_58 dim 1 : vector<1x128xf32>, i32 -> vector<1x128xf32>
        %147 = arith.addf %143, %146 : vector<1x128xf32>
        %148 = arith.maximumf %147, %140 : vector<1x128xf32>
        %149 = arith.subf %147, %140 : vector<1x128xf32>
        %150 = arith.cmpf one, %149, %149 : vector<1x128xf32>
        %151 = arith.addf %147, %140 : vector<1x128xf32>
        %152 = math.absf %149 : vector<1x128xf32>
        %cst_59 = arith.constant 0.000000e+00 : f32
        %153 = vector.broadcast %cst_59 : f32 to vector<1x128xf32>
        %154 = arith.subf %153, %152 : vector<1x128xf32>
        %155 = math.exp %154 : vector<1x128xf32>
        %156 = math.log1p %155 : vector<1x128xf32>
        %157 = arith.addf %148, %156 : vector<1x128xf32>
        %158 = arith.select %150, %151, %157 : vector<1x128xi1>, vector<1x128xf32>
        %159 = arith.select %145, %158, %140 : vector<1x128xi1>, vector<1x128xf32>
        %c2_i32_60 = arith.constant 2 : i32
        %160 = tpu.dynamic_rotate %143 by %c2_i32_60 dim 1 : vector<1x128xf32>, i32 -> vector<1x128xf32>
        %161 = arith.addf %143, %160 : vector<1x128xf32>
        %162 = arith.select %145, %161, %143 : vector<1x128xi1>, vector<1x128xf32>
        %c4_i32_61 = arith.constant 4 : i32
        %163 = vector.broadcast %c4_i32_61 : i32 to vector<1x128xi32>
        %164 = arith.cmpi sge, %57, %163 : vector<1x128xi32>
        %c4_i32_62 = arith.constant 4 : i32
        %165 = tpu.dynamic_rotate %159 by %c4_i32_62 dim 1 : vector<1x128xf32>, i32 -> vector<1x128xf32>
        %166 = arith.addf %162, %165 : vector<1x128xf32>
        %167 = arith.maximumf %166, %159 : vector<1x128xf32>
        %168 = arith.subf %166, %159 : vector<1x128xf32>
        %169 = arith.cmpf one, %168, %168 : vector<1x128xf32>
        %170 = arith.addf %166, %159 : vector<1x128xf32>
        %171 = math.absf %168 : vector<1x128xf32>
        %cst_63 = arith.constant 0.000000e+00 : f32
        %172 = vector.broadcast %cst_63 : f32 to vector<1x128xf32>
        %173 = arith.subf %172, %171 : vector<1x128xf32>
        %174 = math.exp %173 : vector<1x128xf32>
        %175 = math.log1p %174 : vector<1x128xf32>
        %176 = arith.addf %167, %175 : vector<1x128xf32>
        %177 = arith.select %169, %170, %176 : vector<1x128xi1>, vector<1x128xf32>
        %178 = arith.select %164, %177, %159 : vector<1x128xi1>, vector<1x128xf32>
        scf.yield %178 : vector<1x128xf32>
      }
      %c1_i32_35 = arith.constant 1 : i32
      %85 = arith.subi %51, %c1_i32_35 : i32
      %86 = arith.index_cast %85 : i32 to index
      %c0_36 = arith.constant 0 : index
      %87 = vector.load %arg7[%86, %c0_36] : memref<24x128xf32, #tpu.memory_space<vmem>>, vector<1x128xf32>
      %c1_i32_37 = arith.constant 1 : i32
      %88 = arith.subi %56, %c1_i32_37 : i32
      %89 = vector.broadcast %88 : i32 to vector<1x128xi32>
      %90 = arith.cmpi eq, %57, %89 : vector<1x128xi32>
      %cst_38 = arith.constant 0.000000e+00 : f32
      %91 = vector.broadcast %cst_38 : f32 to vector<1x128xf32>
      %92 = arith.select %90, %84, %91 : vector<1x128xi1>, vector<1x128xf32>
      %93 = vector.shape_cast %92 : vector<1x128xf32> to vector<1x1x128xf32>
      %cst_39 = arith.constant dense<0.000000e+00> : vector<1xf32>
      %94 = vector.multi_reduction <add>, %93, %cst_39 [1, 2] : vector<1x1x128xf32> to vector<1xf32>
      %95 = vector.shape_cast %94 : vector<1xf32> to vector<1x1x1xf32>
      %96 = vector.extract %95[0, 0, 0] : f32 from vector<1x1x1xf32>
      %97 = vector.broadcast %96 : f32 to vector<1x1xf32>
      %c1_i32_40 = arith.constant 1 : i32
      %98 = arith.subi %56, %c1_i32_40 : i32
      %99 = vector.broadcast %98 : i32 to vector<1x128xi32>
      %100 = arith.cmpi eq, %57, %99 : vector<1x128xi32>
      %cst_41 = arith.constant 0.000000e+00 : f32
      %101 = vector.broadcast %cst_41 : f32 to vector<1x128xf32>
      %102 = arith.select %100, %87, %101 : vector<1x128xi1>, vector<1x128xf32>
      %103 = vector.shape_cast %102 : vector<1x128xf32> to vector<1x1x128xf32>
      %cst_42 = arith.constant dense<0.000000e+00> : vector<1xf32>
      %104 = vector.multi_reduction <add>, %103, %cst_42 [1, 2] : vector<1x1x128xf32> to vector<1xf32>
      %105 = vector.shape_cast %104 : vector<1xf32> to vector<1x1x1xf32>
      %106 = vector.extract %105[0, 0, 0] : f32 from vector<1x1x1xf32>
      %107 = vector.broadcast %106 : f32 to vector<1x1xf32>
      %108 = arith.addf %97, %107 : vector<1x1xf32>
      %cst_43 = arith.constant -1.000000e+00 : f32
      %109 = vector.broadcast %cst_43 : f32 to vector<1x1xf32>
      %110 = arith.mulf %109, %108 : vector<1x1xf32>
      %c0_44 = arith.constant 0 : index
      %c0_45 = arith.constant 0 : index
      %c0_46 = arith.constant 0 : index
      %111 = vector.load %arg6[%c0_44, %c0_45, %c0_46] : memref<1x1x1xf32, #tpu.memory_space<vmem>>, vector<1x1x1xf32>
      %112 = vector.shape_cast %111 : vector<1x1x1xf32> to vector<1x1xf32>
      %113 = vector.shape_cast %110 : vector<1x1xf32> to vector<1x1x1xf32>
      tpu.vector_store %arg6[%c0_44, %c0_45, %c0_46], %113 {strides = array<i32>} : memref<1x1x1xf32, #tpu.memory_space<vmem>>, vector<1x1x1xf32>,
    } else {
    }
    return
  }
  func.func @transform_0(%arg0: i32, %arg1: i32, %arg2: memref<2xi32, #tpu.memory_space<smem>>, %arg3: memref<2xi32, #tpu.memory_space<smem>>) -> (i32, i32, i32, i32) {
    %c0_i32 = arith.constant 0 : i32
    %c0_i32_0 = arith.constant 0 : i32
    %c0_i32_1 = arith.constant 0 : i32
    return %arg0, %arg1, %c0_i32, %c0_i32_0 : i32, i32, i32, i32
  }
  func.func @transform_1(%arg0: i32, %arg1: i32, %arg2: memref<2xi32, #tpu.memory_space<smem>>, %arg3: memref<2xi32, #tpu.memory_space<smem>>) -> (i32, i32, i32) {
    %c0_i32 = arith.constant 0 : i32
    %c0_i32_0 = arith.constant 0 : i32
    %c0_i32_1 = arith.constant 0 : i32
    return %arg0, %c0_i32, %c0_i32_0 : i32, i32, i32
  }
  func.func @transform_2(%arg0: i32, %arg1: i32, %arg2: memref<2xi32, #tpu.memory_space<smem>>, %arg3: memref<2xi32, #tpu.memory_space<smem>>) -> (i32, i32, i32) {
    %c0_i32 = arith.constant 0 : i32
    %c0_i32_0 = arith.constant 0 : i32
    %c0_i32_1 = arith.constant 0 : i32
    return %arg0, %c0_i32, %c0_i32_0 : i32, i32, i32
  }
}

</mosaic_0001>

<llo_original>
// kernel: tpu_custom_call.1
$region0: #{tpu_custom_call.1}
  #allocation0 [shape = 'u32[]', space=smem, size = 0x4, offset = 0x4, fixed_abs, tag = 'smem constant byte address 0x4 - core index']
  #allocation1 [shape = 'u32[144,128]{1,0:T(1,128)}', space=vmem, size = 0x12000, scoped, tag = 'internal scratch']
  #allocation2 [shape = 'f32[24,128]{1,0:T(8,128)}', space=vmem, size = 0x3000, scoped, tag = 'scratch operand']
  #allocation3 [shape = 'f32[24,128]{1,0:T(8,128)}', space=vmem, size = 0x3000, scoped, tag = 'scratch operand']
  #allocation4 [shape = 's32[1]{0}', space=sflag, size = 0x4, scoped, tag = 'scoped memory for tpu_custom_call.1']
  #allocation5 [shape = 'u8[512]{0}', space=smem, size = 0x200, scoped, tag = 'prefetched SMEM operand 0']
  #allocation6 [shape = 'u8[512]{0}', space=smem, size = 0x200, scoped, tag = 'prefetched SMEM operand 1']
  %s0 = inlined_call_operand.vmem [shape: s32[2], index: 0, kind: input, shape index: {}]
  %s1 = inlined_call_operand.vmem [shape: s32[2], index: 1, kind: input, shape index: {}]
  %s2 = inlined_call_operand.vmem [shape: f32[2,24,5,8], index: 2, kind: input, shape index: {}]
  %s3 = inlined_call_operand.vmem [shape: s32[2,5,1], index: 3, kind: input, shape index: {}]
  %s4 = inlined_call_operand.vmem [shape: f32[2,1,1], index: 4, kind: output, shape index: {}]
  %s5 = sld [smem:[#allocation0]]
  $region52: #{tpu_custom_call.1} parent=0
    _
  %s7 = ssub.s32 1, %s5
  %s8 = scalar_select 0, %s7, %s5
  %s9 = sshll.u32 %s0, 4
  %s10 = int_to_ptr.vmem [resolvable:$true] %s9
  %12 = dma.vmem_to_smem %s10, 16, [#allocation5], [#allocation4]
  %s13 = sshll.u32 %s1, 4
  %s14 = int_to_ptr.vmem [resolvable:$true] %s13
  %16 = dma.vmem_to_smem %s14, 16, [#allocation6], [#allocation4]
  %17 = dma.done [#allocation4], 32
  %18 = sfence
  loop: start=0, step=1, limit=4
  $region2: #{tpu_custom_call.1} parent=0 // loop_pre_header
    _
  $region3: #{tpu_custom_call.1} parent=0 // loop_header
    %s20 = sphi 0, %s24
    %p21 = scmp.ge.s32.totalorder %s20, 4
    %s27 = sphi 0, %s39
    %s28 = sphi 0, %s35
    %s29 = sphi 0, %s27
    %s30 = sphi 0, %s28
    %s31 = sphi 0, %s29
    %s32 = sphi 0, %s30
    %s44 = sphi 0, %s46
    %s47 = sphi 0, %s44
    %s48 = sphi 0, %s47
    %s64 = sphi 0, %s48
    %s70 = sphi 0, %s72
    %s73 = sphi 0, %s70
    %s74 = sphi 0, %s73
    %s90 = sphi 0, %s74
    %s96 = sphi 0, %s98
    %s99 = sphi 0, %s96
    %s100 = sphi 0, %s99
    %s116 = sphi 0, %s100
  $region4: #{tpu_custom_call.1} parent=0 // loop_header_branch
    %23 = sbr.rel (%p21) target = $region8
  $region5: #{tpu_custom_call.1} parent=0 // loop_body
    %s25 = ssub.s32 %s20, 1
    %s26 = ssub.s32 %s20, 2
    %s33 = sadd.s32 1, %s28
    %p34 = scmp.ge.s32.totalorder %s33, 1
    %s35 = scalar_select %p34, 0, %s33
    %s36 = sadd.s32 1, %s27
    %s37 = scalar_select %p34, %s36, %s27
    %p38 = scmp.ge.s32.totalorder %s37, 2
    %s39 = scalar_select %p38, 0, %s37
    %s40 = ssub.s32 %s27, %s39
    %s41 = ssub.s32 %s28, %s35
    %s42 = sor.u32 %s40, %s41
    %p43 = scmp.eq.s32.totalorder %s42, 0
    %s45 = sadd.s32 %s44, 1
    %s46 = scalar_select %p43, %s44, %s45
    %p49 = pneg %p43
    %p50 = scmp.eq.s32.totalorder %s20, 1
    %p51 = por %p49, %p50
    %p52 = scmp.ne.s32.totalorder %s44, %s47
    %p53 = scmp.eq.s32.totalorder %s20, 0
    %p54 = por %p52, %p53
    %p55 = scmp.ne.s32.totalorder %s44, %s47
    %p56 = scmp.eq.s32.totalorder %s25, 1
    %p57 = por %p55, %p56
    %p58 = scmp.ne.s32.totalorder %s47, %s48
    %p59 = scmp.eq.s32.totalorder %s25, 0
    %p60 = por %p58, %p59
    %p61 = scmp.ne.s32.totalorder %s47, %s48
    %p62 = scmp.eq.s32.totalorder %s26, 1
    %p63 = por %p61, %p62
    %p65 = scmp.ne.s32.totalorder %s48, %s64
    %p66 = scmp.eq.s32.totalorder %s26, 0
    %p67 = por %p65, %p66
    %s68 = ssub.s32 %s27, %s39
    %p69 = scmp.eq.s32.totalorder %s68, 0
    %s71 = sadd.s32 %s70, 1
    %s72 = scalar_select %p69, %s70, %s71
    %p75 = pneg %p69
    %p76 = scmp.eq.s32.totalorder %s20, 1
    %p77 = por %p75, %p76
    %p78 = scmp.ne.s32.totalorder %s70, %s73
    %p79 = scmp.eq.s32.totalorder %s20, 0
    %p80 = por %p78, %p79
    %p81 = scmp.ne.s32.totalorder %s70, %s73
    %p82 = scmp.eq.s32.totalorder %s25, 1
    %p83 = por %p81, %p82
    %p84 = scmp.ne.s32.totalorder %s73, %s74
    %p85 = scmp.eq.s32.totalorder %s25, 0
    %p86 = por %p84, %p85
    %p87 = scmp.ne.s32.totalorder %s73, %s74
    %p88 = scmp.eq.s32.totalorder %s26, 1
    %p89 = por %p87, %p88
    %p91 = scmp.ne.s32.totalorder %s74, %s90
    %p92 = scmp.eq.s32.totalorder %s26, 0
    %p93 = por %p91, %p92
    %s94 = ssub.s32 %s27, %s39
    %p95 = scmp.eq.s32.totalorder %s94, 0
    %s97 = sadd.s32 %s96, 1
    %s98 = scalar_select %p95, %s96, %s97
    %p101 = pneg %p95
    %p102 = scmp.eq.s32.totalorder %s20, 1
    %p103 = por %p101, %p102
    %p104 = scmp.ne.s32.totalorder %s96, %s99
    %p105 = scmp.eq.s32.totalorder %s20, 0
    %p106 = por %p104, %p105
    %p107 = scmp.ne.s32.totalorder %s96, %s99
    %p108 = scmp.eq.s32.totalorder %s25, 1
    %p109 = por %p107, %p108
    %p110 = scmp.ne.s32.totalorder %s99, %s100
    %p111 = scmp.eq.s32.totalorder %s25, 0
    %p112 = por %p110, %p111
    %p113 = scmp.ne.s32.totalorder %s99, %s100
    %p114 = scmp.eq.s32.totalorder %s26, 1
    %p115 = por %p113, %p114
    %p117 = scmp.ne.s32.totalorder %s100, %s116
    %p118 = scmp.eq.s32.totalorder %s26, 0
    %p119 = por %p117, %p118
    %p120 = scmp.le.s32.totalorder 1, %s20
    %p121 = scmp.lt.s32.totalorder %s20, 3
    %p122 = pnand %p120, %p121
    %p123 = pneg %p122
    // Predicated region
    $region9: #{tpu_custom_call.1} parent=5 // pred_check
      _
    $region10: #{tpu_custom_call.1} parent=5 // pred_check_branch
      %125 = sbr.rel (%p122) target = $region12
    $region11: #{tpu_custom_call.1} parent=5 // pred_region
      %s126 = ssub.s32 %s20, 1
    $region12: #{tpu_custom_call.1} parent=5 // pred_fallthru
      _
    %p127 = scmp.lt.s32.totalorder %s20, 2
    // Predicated region
    $region13: #{tpu_custom_call.1} parent=5 // pred_check
      %p128 = pneg %p127
    $region14: #{tpu_custom_call.1} parent=5 // pred_check_branch
      %130 = sbr.rel (%p128) target = $region16
    $region15: #{tpu_custom_call.1} parent=5 // pred_region
      // Predicated region
      $region17: #{tpu_custom_call.1} parent=15 // pred_check
        %p131 = pneg %p54
      $region18: #{tpu_custom_call.1} parent=15 // pred_check_branch
        %133 = sbr.rel (%p131) target = $region20
      $region19: #{tpu_custom_call.1} parent=15 // pred_region
        %s134 = smul.u32 24, %s28
        %p135 = scmp.lt.s32.totalorder %s27, 1
        %s136 = scalar_select %p135, %s27, 1
        %p137 = scmp.lt.s32.totalorder %s134, 23
        %s138 = scalar_select %p137, %s134, 23
        %s139 = smul.addr %s136, 24
        %s140 = sadd.s32 %s138, %s139
        %s141 = smul.addr %s140, 8
        %s142 = scalar_lea.vmem %s2, %s141
        %s143 = smul.u32 24, %s28
      $region20: #{tpu_custom_call.1} parent=15 // pred_fallthru
        _
      // Predicated region
      $region21: #{tpu_custom_call.1} parent=15 // pred_check
        %p144 = pneg %p80
      $region22: #{tpu_custom_call.1} parent=15 // pred_check_branch
        %146 = sbr.rel (%p144) target = $region24
      $region23: #{tpu_custom_call.1} parent=15 // pred_region
        %p147 = scmp.lt.s32.totalorder %s27, 1
        %s148 = scalar_select %p147, %s27, 1
        %s149 = smul.addr %s148, 8
        %s150 = scalar_lea.vmem %s3, %s149
      $region24: #{tpu_custom_call.1} parent=15 // pred_fallthru
        _
    $region16: #{tpu_custom_call.1} parent=5 // pred_fallthru
      _
    %p151 = scmp.le.s32.totalorder 1, %s20
    %p152 = scmp.lt.s32.totalorder %s20, 3
    %p153 = pnand %p151, %p152
    %p154 = pneg %p153
    // Predicated region
    $region25: #{tpu_custom_call.1} parent=5 // pred_check
      _
    $region26: #{tpu_custom_call.1} parent=5 // pred_check_branch
      %156 = sbr.rel (%p153) target = $region28
    $region27: #{tpu_custom_call.1} parent=5 // pred_region
      %s157 = ssub.s32 %s20, 1
      %s158 = smul.u32 24, %s30
      %p159 = scmp.lt.s32.totalorder %s29, 1
      %s160 = scalar_select %p159, %s29, 1
      %p161 = scmp.lt.s32.totalorder %s158, 23
      %s162 = scalar_select %p161, %s158, 23
      %s163 = smul.addr %s160, 24
      %s164 = sadd.s32 %s162, %s163
      %s165 = smul.addr %s164, 8
      %s166 = scalar_lea.vmem %s2, %s165
      %p167 = pneg %p60
      %p168 = pneg %p57
      %p169 = scmp.lt.s32.totalorder %s29, 1
      %s170 = scalar_select %p169, %s29, 1
      %s171 = smul.addr %s170, 8
      %s172 = scalar_lea.vmem %s3, %s171
      %p173 = pneg %p86
      %p174 = pneg %p83
      %p175 = pneg %p112
      %p176 = pneg %p109
      %p177 = scmp.lt.s32.totalorder %s29, 1
      %s178 = scalar_select %p177, %s29, 1
      %s179 = scalar_lea.vmem %s4, %s178
      %s180 = smul.u32 24, %s30
      %p181 = scmp.lt.s32.totalorder %s29, 1
      %s182 = scalar_select %p181, %s29, 1
      %p183 = scmp.lt.s32.totalorder %s180, 23
      %s184 = scalar_select %p183, %s180, 23
      %s185 = smul.addr %s182, 24
      %s186 = sadd.s32 %s184, %s185
      %s187 = smul.addr %s186, 8
      %s188 = scalar_lea.vmem %s2, %s187
      %s189 = smul.u32 24, %s30
      %p190 = scmp.lt.s32.totalorder %s29, 1
      %s191 = scalar_select %p190, %s29, 1
      %s192 = smul.addr %s191, 8
      %s193 = scalar_lea.vmem %s3, %s192
      %p194 = scmp.lt.s32.totalorder %s29, 1
      %s195 = scalar_select %p194, %s29, 1
      %s196 = scalar_lea.vmem %s4, %s195
      %v197 = vld [vmem:[%s188] sm:$0x1f]
      %v198 = vld [vmem:[%s188 + $0x8] sm:$0x1f]
      %v199 = vld [vmem:[%s188 + $0x10] sm:$0x1f]
      %v200 = vld [vmem:[%s188 + $0x18] sm:$0x1f]
      %v201 = vld [vmem:[%s188 + $0x20] sm:$0x1f]
      %v202 = vld [vmem:[%s188 + $0x28] sm:$0x1f]
      %v203 = vld [vmem:[%s188 + $0x30] sm:$0x1f]
      %v204 = vld [vmem:[%s188 + $0x38] sm:$0x1f]
      %v205 = vld [vmem:[%s188 + $0x40] sm:$0x1f]
      %v206 = vld [vmem:[%s188 + $0x48] sm:$0x1f]
      %v207 = vld [vmem:[%s188 + $0x50] sm:$0x1f]
      %v208 = vld [vmem:[%s188 + $0x58] sm:$0x1f]
      %v209 = vld [vmem:[%s188 + $0x60] sm:$0x1f]
      %v210 = vld [vmem:[%s188 + $0x68] sm:$0x1f]
      %v211 = vld [vmem:[%s188 + $0x70] sm:$0x1f]
      %v212 = vld [vmem:[%s188 + $0x78] sm:$0x1f]
      %v213 = vld [vmem:[%s188 + $0x80] sm:$0x1f]
      %v214 = vld [vmem:[%s188 + $0x88] sm:$0x1f]
      %v215 = vld [vmem:[%s188 + $0x90] sm:$0x1f]
      %v216 = vld [vmem:[%s188 + $0x98] sm:$0x1f]
      %v217 = vld [vmem:[%s188 + $0xa0] sm:$0x1f]
      %v218 = vld [vmem:[%s188 + $0xa8] sm:$0x1f]
      %v219 = vld [vmem:[%s188 + $0xb0] sm:$0x1f]
      %v220 = vld [vmem:[%s188 + $0xb8] sm:$0x1f]
      %vm221 = vcmask 61440
      %v222 = vsel %vm221, %v197, -inf
      %223 = vmax.xlane.f32.xlu0 %v222
      %v224 = vpop.xlane.xlu0 %223
      %v225 = vsel %vm221, %v198, -inf
      %226 = vmax.xlane.f32.xlu0 %v225
      %v227 = vpop.xlane.xlu0 %226
      %v228 = vsel %vm221, %v199, -inf
      %229 = vmax.xlane.f32.xlu0 %v228
      %v230 = vpop.xlane.xlu0 %229
      %v231 = vsel %vm221, %v200, -inf
      %232 = vmax.xlane.f32.xlu0 %v231
      %v233 = vpop.xlane.xlu0 %232
      %v234 = vsel %vm221, %v201, -inf
      %235 = vmax.xlane.f32.xlu0 %v234
      %v236 = vpop.xlane.xlu0 %235
      %v237 = vsel %vm221, %v202, -inf
      %238 = vmax.xlane.f32.xlu0 %v237
      %v239 = vpop.xlane.xlu0 %238
      %v240 = vsel %vm221, %v203, -inf
      %241 = vmax.xlane.f32.xlu0 %v240
      %v242 = vpop.xlane.xlu0 %241
      %v243 = vsel %vm221, %v204, -inf
      %244 = vmax.xlane.f32.xlu0 %v243
      %v245 = vpop.xlane.xlu0 %244
      %v246 = vsel %vm221, %v205, -inf
      %247 = vmax.xlane.f32.xlu0 %v246
      %v248 = vpop.xlane.xlu0 %247
      %v249 = vsel %vm221, %v206, -inf
      %250 = vmax.xlane.f32.xlu0 %v249
      %v251 = vpop.xlane.xlu0 %250
      %v252 = vsel %vm221, %v207, -inf
      %253 = vmax.xlane.f32.xlu0 %v252
      %v254 = vpop.xlane.xlu0 %253
      %v255 = vsel %vm221, %v208, -inf
      %256 = vmax.xlane.f32.xlu0 %v255
      %v257 = vpop.xlane.xlu0 %256
      %v258 = vsel %vm221, %v209, -inf
      %259 = vmax.xlane.f32.xlu0 %v258
      %v260 = vpop.xlane.xlu0 %259
      %v261 = vsel %vm221, %v210, -inf
      %262 = vmax.xlane.f32.xlu0 %v261
      %v263 = vpop.xlane.xlu0 %262
      %v264 = vsel %vm221, %v211, -inf
      %265 = vmax.xlane.f32.xlu0 %v264
      %v266 = vpop.xlane.xlu0 %265
      %v267 = vsel %vm221, %v212, -inf
      %268 = vmax.xlane.f32.xlu0 %v267
      %v269 = vpop.xlane.xlu0 %268
      %v270 = vsel %vm221, %v213, -inf
      %271 = vmax.xlane.f32.xlu0 %v270
      %v272 = vpop.xlane.xlu0 %271
      %v273 = vsel %vm221, %v214, -inf
      %274 = vmax.xlane.f32.xlu0 %v273
      %v275 = vpop.xlane.xlu0 %274
      %v276 = vsel %vm221, %v215, -inf
      %277 = vmax.xlane.f32.xlu0 %v276
      %v278 = vpop.xlane.xlu0 %277
      %v279 = vsel %vm221, %v216, -inf
      %280 = vmax.xlane.f32.xlu0 %v279
      %v281 = vpop.xlane.xlu0 %280
      %v282 = vsel %vm221, %v217, -inf
      %283 = vmax.xlane.f32.xlu0 %v282
      %v284 = vpop.xlane.xlu0 %283
      %v285 = vsel %vm221, %v218, -inf
      %286 = vmax.xlane.f32.xlu0 %v285
      %v287 = vpop.xlane.xlu0 %286
      %v288 = vsel %vm221, %v219, -inf
      %289 = vmax.xlane.f32.xlu0 %v288
      %v290 = vpop.xlane.xlu0 %289
      %v291 = vsel %vm221, %v220, -inf
      %292 = vmax.xlane.f32.xlu0 %v291
      %v293 = vpop.xlane.xlu0 %292
      %v294 = vsub.f32 %v197, %v224
      %v295 = vsub.f32 %v198, %v227
      %v296 = vsub.f32 %v199, %v230
      %v297 = vsub.f32 %v200, %v233
      %v298 = vsub.f32 %v201, %v236
      %v299 = vsub.f32 %v202, %v239
      %v300 = vsub.f32 %v203, %v242
      %v301 = vsub.f32 %v204, %v245
      %v302 = vsub.f32 %v205, %v248
      %v303 = vsub.f32 %v206, %v251
      %v304 = vsub.f32 %v207, %v254
      %v305 = vsub.f32 %v208, %v257
      %v306 = vsub.f32 %v209, %v260
      %v307 = vsub.f32 %v210, %v263
      %v308 = vsub.f32 %v211, %v266
      %v309 = vsub.f32 %v212, %v269
      %v310 = vsub.f32 %v213, %v272
      %v311 = vsub.f32 %v214, %v275
      %v312 = vsub.f32 %v215, %v278
      %v313 = vsub.f32 %v216, %v281
      %v314 = vsub.f32 %v217, %v284
      %v315 = vsub.f32 %v218, %v287
      %v316 = vsub.f32 %v219, %v290
      %v317 = vsub.f32 %v220, %v293
      %v318 = vmul.f32 %v294, 1.442695
      %v319 = vpow.pop %v318
      %v320 = vmul.f32 %v295, 1.442695
      %v321 = vpow.pop %v320
      %v322 = vmul.f32 %v296, 1.442695
      %v323 = vpow.pop %v322
      %v324 = vmul.f32 %v297, 1.442695
      %v325 = vpow.pop %v324
      %v326 = vmul.f32 %v298, 1.442695
      %v327 = vpow.pop %v326
      %v328 = vmul.f32 %v299, 1.442695
      %v329 = vpow.pop %v328
      %v330 = vmul.f32 %v300, 1.442695
      %v331 = vpow.pop %v330
      %v332 = vmul.f32 %v301, 1.442695
      %v333 = vpow.pop %v332
      %v334 = vmul.f32 %v302, 1.442695
      %v335 = vpow.pop %v334
      %v336 = vmul.f32 %v303, 1.442695
      %v337 = vpow.pop %v336
      %v338 = vmul.f32 %v304, 1.442695
      %v339 = vpow.pop %v338
      %v340 = vmul.f32 %v305, 1.442695
      %v341 = vpow.pop %v340
      %v342 = vmul.f32 %v306, 1.442695
      %v343 = vpow.pop %v342
      %v344 = vmul.f32 %v307, 1.442695
      %v345 = vpow.pop %v344
      %v346 = vmul.f32 %v308, 1.442695
      %v347 = vpow.pop %v346
      %v348 = vmul.f32 %v309, 1.442695
      %v349 = vpow.pop %v348
      %v350 = vmul.f32 %v310, 1.442695
      %v351 = vpow.pop %v350
      %v352 = vmul.f32 %v311, 1.442695
      %v353 = vpow.pop %v352
      %v354 = vmul.f32 %v312, 1.442695
      %v355 = vpow.pop %v354
      %v356 = vmul.f32 %v313, 1.442695
      %v357 = vpow.pop %v356
      %v358 = vmul.f32 %v314, 1.442695
      %v359 = vpow.pop %v358
      %v360 = vmul.f32 %v315, 1.442695
      %v361 = vpow.pop %v360
      %v362 = vmul.f32 %v316, 1.442695
      %v363 = vpow.pop %v362
      %v364 = vmul.f32 %v317, 1.442695
      %v365 = vpow.pop %v364
      %v366 = vsel %vm221, %v319, 0.0
      %367 = vadd.xlane.f32.xlu0 %v366
      %v368 = vpop.xlane.xlu0 %367
      %v369 = vsel %vm221, %v321, 0.0
      %370 = vadd.xlane.f32.xlu0 %v369
      %v371 = vpop.xlane.xlu0 %370
      %v372 = vsel %vm221, %v323, 0.0
      %373 = vadd.xlane.f32.xlu0 %v372
      %v374 = vpop.xlane.xlu0 %373
      %v375 = vsel %vm221, %v325, 0.0
      %376 = vadd.xlane.f32.xlu0 %v375
      %v377 = vpop.xlane.xlu0 %376
      %v378 = vsel %vm221, %v327, 0.0
      %379 = vadd.xlane.f32.xlu0 %v378
      %v380 = vpop.xlane.xlu0 %379
      %v381 = vsel %vm221, %v329, 0.0
      %382 = vadd.xlane.f32.xlu0 %v381
      %v383 = vpop.xlane.xlu0 %382
      %v384 = vsel %vm221, %v331, 0.0
      %385 = vadd.xlane.f32.xlu0 %v384
      %v386 = vpop.xlane.xlu0 %385
      %v387 = vsel %vm221, %v333, 0.0
      %388 = vadd.xlane.f32.xlu0 %v387
      %v389 = vpop.xlane.xlu0 %388
      %v390 = vsel %vm221, %v335, 0.0
      %391 = vadd.xlane.f32.xlu0 %v390
      %v392 = vpop.xlane.xlu0 %391
      %v393 = vsel %vm221, %v337, 0.0
      %394 = vadd.xlane.f32.xlu0 %v393
      %v395 = vpop.xlane.xlu0 %394
      %v396 = vsel %vm221, %v339, 0.0
      %397 = vadd.xlane.f32.xlu0 %v396
      %v398 = vpop.xlane.xlu0 %397
      %v399 = vsel %vm221, %v341, 0.0
      %400 = vadd.xlane.f32.xlu0 %v399
      %v401 = vpop.xlane.xlu0 %400
      %v402 = vsel %vm221, %v343, 0.0
      %403 = vadd.xlane.f32.xlu0 %v402
      %v404 = vpop.xlane.xlu0 %403
      %v405 = vsel %vm221, %v345, 0.0
      %406 = vadd.xlane.f32.xlu0 %v405
      %v407 = vpop.xlane.xlu0 %406
      %v408 = vsel %vm221, %v347, 0.0
      %409 = vadd.xlane.f32.xlu0 %v408
      %v410 = vpop.xlane.xlu0 %409
      %v411 = vsel %vm221, %v349, 0.0
      %412 = vadd.xlane.f32.xlu0 %v411
      %v413 = vpop.xlane.xlu0 %412
      %v414 = vsel %vm221, %v351, 0.0
      %415 = vadd.xlane.f32.xlu0 %v414
      %v416 = vpop.xlane.xlu0 %415
      %v417 = vsel %vm221, %v353, 0.0
      %418 = vadd.xlane.f32.xlu0 %v417
      %v419 = vpop.xlane.xlu0 %418
      %v420 = vsel %vm221, %v355, 0.0
      %421 = vadd.xlane.f32.xlu0 %v420
      %v422 = vpop.xlane.xlu0 %421
      %v423 = vsel %vm221, %v357, 0.0
      %424 = vadd.xlane.f32.xlu0 %v423
      %v425 = vpop.xlane.xlu0 %424
      %v426 = vsel %vm221, %v359, 0.0
      %427 = vadd.xlane.f32.xlu0 %v426
      %v428 = vpop.xlane.xlu0 %427
      %v429 = vsel %vm221, %v361, 0.0
      %430 = vadd.xlane.f32.xlu0 %v429
      %v431 = vpop.xlane.xlu0 %430
      %v432 = vsel %vm221, %v363, 0.0
      %433 = vadd.xlane.f32.xlu0 %v432
      %v434 = vpop.xlane.xlu0 %433
      %v435 = vsel %vm221, %v365, 0.0
      %436 = vadd.xlane.f32.xlu0 %v435
      %v437 = vpop.xlane.xlu0 %436
      %v438 = vlog2.pop %v368
      %v439 = vmul.f32 %v438, 0.6931472
      %v440 = vlog2.pop %v371
      %v441 = vmul.f32 %v440, 0.6931472
      %v442 = vlog2.pop %v374
      %v443 = vmul.f32 %v442, 0.6931472
      %v444 = vlog2.pop %v377
      %v445 = vmul.f32 %v444, 0.6931472
      %v446 = vlog2.pop %v380
      %v447 = vmul.f32 %v446, 0.6931472
      %v448 = vlog2.pop %v383
      %v449 = vmul.f32 %v448, 0.6931472
      %v450 = vlog2.pop %v386
      %v451 = vmul.f32 %v450, 0.6931472
      %v452 = vlog2.pop %v389
      %v453 = vmul.f32 %v452, 0.6931472
      %v454 = vlog2.pop %v392
      %v455 = vmul.f32 %v454, 0.6931472
      %v456 = vlog2.pop %v395
      %v457 = vmul.f32 %v456, 0.6931472
      %v458 = vlog2.pop %v398
      %v459 = vmul.f32 %v458, 0.6931472
      %v460 = vlog2.pop %v401
      %v461 = vmul.f32 %v460, 0.6931472
      %v462 = vlog2.pop %v404
      %v463 = vmul.f32 %v462, 0.6931472
      %v464 = vlog2.pop %v407
      %v465 = vmul.f32 %v464, 0.6931472
      %v466 = vlog2.pop %v410
      %v467 = vmul.f32 %v466, 0.6931472
      %v468 = vlog2.pop %v413
      %v469 = vmul.f32 %v468, 0.6931472
      %v470 = vlog2.pop %v416
      %v471 = vmul.f32 %v470, 0.6931472
      %v472 = vlog2.pop %v419
      %v473 = vmul.f32 %v472, 0.6931472
      %v474 = vlog2.pop %v422
      %v475 = vmul.f32 %v474, 0.6931472
      %v476 = vlog2.pop %v425
      %v477 = vmul.f32 %v476, 0.6931472
      %v478 = vlog2.pop %v428
      %v479 = vmul.f32 %v478, 0.6931472
      %v480 = vlog2.pop %v431
      %v481 = vmul.f32 %v480, 0.6931472
      %v482 = vlog2.pop %v434
      %v483 = vmul.f32 %v482, 0.6931472
      %v484 = vlog2.pop %v437
      %v485 = vmul.f32 %v484, 0.6931472
      %v486 = vadd.f32 %v224, %v439
      %v487 = vadd.f32 %v227, %v441
      %v488 = vadd.f32 %v230, %v443
      %v489 = vadd.f32 %v233, %v445
      %v490 = vadd.f32 %v236, %v447
      %v491 = vadd.f32 %v239, %v449
      %v492 = vadd.f32 %v242, %v451
      %v493 = vadd.f32 %v245, %v453
      %v494 = vadd.f32 %v248, %v455
      %v495 = vadd.f32 %v251, %v457
      %v496 = vadd.f32 %v254, %v459
      %v497 = vadd.f32 %v257, %v461
      %v498 = vadd.f32 %v260, %v463
      %v499 = vadd.f32 %v263, %v465
      %v500 = vadd.f32 %v266, %v467
      %v501 = vadd.f32 %v269, %v469
      %v502 = vadd.f32 %v272, %v471
      %v503 = vadd.f32 %v275, %v473
      %v504 = vadd.f32 %v278, %v475
      %v505 = vadd.f32 %v281, %v477
      %v506 = vadd.f32 %v284, %v479
      %v507 = vadd.f32 %v287, %v481
      %v508 = vadd.f32 %v290, %v483
      %v509 = vadd.f32 %v293, %v485
      %v510 = vlaneseq
      %v511 = vand.u32 %v510, 127
      %v512 = vld [vmem:[%s193] sm:$0x1f]
      %vm513 = vcmp.eq.s32.totalorder %v511, 0
      %514 = vset.pattern.permute.xlu0 0
      %515 = vperm.xlu0 %514, %v512
      %v516 = vpop.permute.xlu0 %515
      %vm517 = vcmp.eq.s32.totalorder %v511, %v516
      %v518 = vsel %vm513, 1, 0
      %vm519 = vcmp.eq.s32.totalorder %v518, 1
      %v520 = vsel %vm519, %v197, 0.0
      %v521 = vsel %vm519, %v198, 0.0
      %v522 = vsel %vm519, %v199, 0.0
      %v523 = vsel %vm519, %v200, 0.0
      %v524 = vsel %vm519, %v201, 0.0
      %v525 = vsel %vm519, %v202, 0.0
      %v526 = vsel %vm519, %v203, 0.0
      %v527 = vsel %vm519, %v204, 0.0
      %v528 = vsel %vm519, %v205, 0.0
      %v529 = vsel %vm519, %v206, 0.0
      %v530 = vsel %vm519, %v207, 0.0
      %v531 = vsel %vm519, %v208, 0.0
      %v532 = vsel %vm519, %v209, 0.0
      %v533 = vsel %vm519, %v210, 0.0
      %v534 = vsel %vm519, %v211, 0.0
      %v535 = vsel %vm519, %v212, 0.0
      %v536 = vsel %vm519, %v213, 0.0
      %v537 = vsel %vm519, %v214, 0.0
      %v538 = vsel %vm519, %v215, 0.0
      %v539 = vsel %vm519, %v216, 0.0
      %v540 = vsel %vm519, %v217, 0.0
      %v541 = vsel %vm519, %v218, 0.0
      %v542 = vsel %vm519, %v219, 0.0
      %v543 = vsel %vm519, %v220, 0.0
      %v544 = vsel %vm221, %v520, 0.0
      %545 = vadd.xlane.f32.xlu0 %v544
      %v546 = vpop.xlane.xlu0 %545
      %v547 = vsel %vm221, %v521, 0.0
      %548 = vadd.xlane.f32.xlu0 %v547
      %v549 = vpop.xlane.xlu0 %548
      %v550 = vsel %vm221, %v522, 0.0
      %551 = vadd.xlane.f32.xlu0 %v550
      %v552 = vpop.xlane.xlu0 %551
      %v553 = vsel %vm221, %v523, 0.0
      %554 = vadd.xlane.f32.xlu0 %v553
      %v555 = vpop.xlane.xlu0 %554
      %v556 = vsel %vm221, %v524, 0.0
      %557 = vadd.xlane.f32.xlu0 %v556
      %v558 = vpop.xlane.xlu0 %557
      %v559 = vsel %vm221, %v525, 0.0
      %560 = vadd.xlane.f32.xlu0 %v559
      %v561 = vpop.xlane.xlu0 %560
      %v562 = vsel %vm221, %v526, 0.0
      %563 = vadd.xlane.f32.xlu0 %v562
      %v564 = vpop.xlane.xlu0 %563
      %v565 = vsel %vm221, %v527, 0.0
      %566 = vadd.xlane.f32.xlu0 %v565
      %v567 = vpop.xlane.xlu0 %566
      %v568 = vsel %vm221, %v528, 0.0
      %569 = vadd.xlane.f32.xlu0 %v568
      %v570 = vpop.xlane.xlu0 %569
      %v571 = vsel %vm221, %v529, 0.0
      %572 = vadd.xlane.f32.xlu0 %v571
      %v573 = vpop.xlane.xlu0 %572
      %v574 = vsel %vm221, %v530, 0.0
      %575 = vadd.xlane.f32.xlu0 %v574
      %v576 = vpop.xlane.xlu0 %575
      %v577 = vsel %vm221, %v531, 0.0
      %578 = vadd.xlane.f32.xlu0 %v577
      %v579 = vpop.xlane.xlu0 %578
      %v580 = vsel %vm221, %v532, 0.0
      %581 = vadd.xlane.f32.xlu0 %v580
      %v582 = vpop.xlane.xlu0 %581
      %v583 = vsel %vm221, %v533, 0.0
      %584 = vadd.xlane.f32.xlu0 %v583
      %v585 = vpop.xlane.xlu0 %584
      %v586 = vsel %vm221, %v534, 0.0
      %587 = vadd.xlane.f32.xlu0 %v586
      %v588 = vpop.xlane.xlu0 %587
      %v589 = vsel %vm221, %v535, 0.0
      %590 = vadd.xlane.f32.xlu0 %v589
      %v591 = vpop.xlane.xlu0 %590
      %v592 = vsel %vm221, %v536, 0.0
      %593 = vadd.xlane.f32.xlu0 %v592
      %v594 = vpop.xlane.xlu0 %593
      %v595 = vsel %vm221, %v537, 0.0
      %596 = vadd.xlane.f32.xlu0 %v595
      %v597 = vpop.xlane.xlu0 %596
      %v598 = vsel %vm221, %v538, 0.0
      %599 = vadd.xlane.f32.xlu0 %v598
      %v600 = vpop.xlane.xlu0 %599
      %v601 = vsel %vm221, %v539, 0.0
      %602 = vadd.xlane.f32.xlu0 %v601
      %v603 = vpop.xlane.xlu0 %602
      %v604 = vsel %vm221, %v540, 0.0
      %605 = vadd.xlane.f32.xlu0 %v604
      %v606 = vpop.xlane.xlu0 %605
      %v607 = vsel %vm221, %v541, 0.0
      %608 = vadd.xlane.f32.xlu0 %v607
      %v609 = vpop.xlane.xlu0 %608
      %v610 = vsel %vm221, %v542, 0.0
      %611 = vadd.xlane.f32.xlu0 %v610
      %v612 = vpop.xlane.xlu0 %611
      %v613 = vsel %vm221, %v543, 0.0
      %614 = vadd.xlane.f32.xlu0 %v613
      %v615 = vpop.xlane.xlu0 %614
      %v616 = vsel %vm517, 1, 0
      %vm617 = vcmp.eq.s32.totalorder %v616, 1
      %v618 = vsel %vm617, %v197, 0.0
      %v619 = vsel %vm617, %v198, 0.0
      %v620 = vsel %vm617, %v199, 0.0
      %v621 = vsel %vm617, %v200, 0.0
      %v622 = vsel %vm617, %v201, 0.0
      %v623 = vsel %vm617, %v202, 0.0
      %v624 = vsel %vm617, %v203, 0.0
      %v625 = vsel %vm617, %v204, 0.0
      %v626 = vsel %vm617, %v205, 0.0
      %v627 = vsel %vm617, %v206, 0.0
      %v628 = vsel %vm617, %v207, 0.0
      %v629 = vsel %vm617, %v208, 0.0
      %v630 = vsel %vm617, %v209, 0.0
      %v631 = vsel %vm617, %v210, 0.0
      %v632 = vsel %vm617, %v211, 0.0
      %v633 = vsel %vm617, %v212, 0.0
      %v634 = vsel %vm617, %v213, 0.0
      %v635 = vsel %vm617, %v214, 0.0
      %v636 = vsel %vm617, %v215, 0.0
      %v637 = vsel %vm617, %v216, 0.0
      %v638 = vsel %vm617, %v217, 0.0
      %v639 = vsel %vm617, %v218, 0.0
      %v640 = vsel %vm617, %v219, 0.0
      %v641 = vsel %vm617, %v220, 0.0
      %v642 = vsel %vm221, %v618, 0.0
      %643 = vadd.xlane.f32.xlu0 %v642
      %v644 = vpop.xlane.xlu0 %643
      %v645 = vsel %vm221, %v619, 0.0
      %646 = vadd.xlane.f32.xlu0 %v645
      %v647 = vpop.xlane.xlu0 %646
      %v648 = vsel %vm221, %v620, 0.0
      %649 = vadd.xlane.f32.xlu0 %v648
      %v650 = vpop.xlane.xlu0 %649
      %v651 = vsel %vm221, %v621, 0.0
      %652 = vadd.xlane.f32.xlu0 %v651
      %v653 = vpop.xlane.xlu0 %652
      %v654 = vsel %vm221, %v622, 0.0
      %655 = vadd.xlane.f32.xlu0 %v654
      %v656 = vpop.xlane.xlu0 %655
      %v657 = vsel %vm221, %v623, 0.0
      %658 = vadd.xlane.f32.xlu0 %v657
      %v659 = vpop.xlane.xlu0 %658
      %v660 = vsel %vm221, %v624, 0.0
      %661 = vadd.xlane.f32.xlu0 %v660
      %v662 = vpop.xlane.xlu0 %661
      %v663 = vsel %vm221, %v625, 0.0
      %664 = vadd.xlane.f32.xlu0 %v663
      %v665 = vpop.xlane.xlu0 %664
      %v666 = vsel %vm221, %v626, 0.0
      %667 = vadd.xlane.f32.xlu0 %v666
      %v668 = vpop.xlane.xlu0 %667
      %v669 = vsel %vm221, %v627, 0.0
      %670 = vadd.xlane.f32.xlu0 %v669
      %v671 = vpop.xlane.xlu0 %670
      %v672 = vsel %vm221, %v628, 0.0
      %673 = vadd.xlane.f32.xlu0 %v672
      %v674 = vpop.xlane.xlu0 %673
      %v675 = vsel %vm221, %v629, 0.0
      %676 = vadd.xlane.f32.xlu0 %v675
      %v677 = vpop.xlane.xlu0 %676
      %v678 = vsel %vm221, %v630, 0.0
      %679 = vadd.xlane.f32.xlu0 %v678
      %v680 = vpop.xlane.xlu0 %679
      %v681 = vsel %vm221, %v631, 0.0
      %682 = vadd.xlane.f32.xlu0 %v681
      %v683 = vpop.xlane.xlu0 %682
      %v684 = vsel %vm221, %v632, 0.0
      %685 = vadd.xlane.f32.xlu0 %v684
      %v686 = vpop.xlane.xlu0 %685
      %v687 = vsel %vm221, %v633, 0.0
      %688 = vadd.xlane.f32.xlu0 %v687
      %v689 = vpop.xlane.xlu0 %688
      %v690 = vsel %vm221, %v634, 0.0
      %691 = vadd.xlane.f32.xlu0 %v690
      %v692 = vpop.xlane.xlu0 %691
      %v693 = vsel %vm221, %v635, 0.0
      %694 = vadd.xlane.f32.xlu0 %v693
      %v695 = vpop.xlane.xlu0 %694
      %v696 = vsel %vm221, %v636, 0.0
      %697 = vadd.xlane.f32.xlu0 %v696
      %v698 = vpop.xlane.xlu0 %697
      %v699 = vsel %vm221, %v637, 0.0
      %700 = vadd.xlane.f32.xlu0 %v699
      %v701 = vpop.xlane.xlu0 %700
      %v702 = vsel %vm221, %v638, 0.0
      %703 = vadd.xlane.f32.xlu0 %v702
      %v704 = vpop.xlane.xlu0 %703
      %v705 = vsel %vm221, %v639, 0.0
      %706 = vadd.xlane.f32.xlu0 %v705
      %v707 = vpop.xlane.xlu0 %706
      %v708 = vsel %vm221, %v640, 0.0
      %709 = vadd.xlane.f32.xlu0 %v708
      %v710 = vpop.xlane.xlu0 %709
      %v711 = vsel %vm221, %v641, 0.0
      %712 = vadd.xlane.f32.xlu0 %v711
      %v713 = vpop.xlane.xlu0 %712
      %v714 = vsub.f32 %v546, %v486
      %v715 = vsub.f32 %v549, %v487
      %v716 = vsub.f32 %v552, %v488
      %v717 = vsub.f32 %v555, %v489
      %v718 = vsub.f32 %v558, %v490
      %v719 = vsub.f32 %v561, %v491
      %v720 = vsub.f32 %v564, %v492
      %v721 = vsub.f32 %v567, %v493
      %v722 = vsub.f32 %v570, %v494
      %v723 = vsub.f32 %v573, %v495
      %v724 = vsub.f32 %v576, %v496
      %v725 = vsub.f32 %v579, %v497
      %v726 = vsub.f32 %v582, %v498
      %v727 = vsub.f32 %v585, %v499
      %v728 = vsub.f32 %v588, %v500
      %v729 = vsub.f32 %v591, %v501
      %v730 = vsub.f32 %v594, %v502
      %v731 = vsub.f32 %v597, %v503
      %v732 = vsub.f32 %v600, %v504
      %v733 = vsub.f32 %v603, %v505
      %v734 = vsub.f32 %v606, %v506
      %v735 = vsub.f32 %v609, %v507
      %v736 = vsub.f32 %v612, %v508
      %v737 = vsub.f32 %v615, %v509
      %v738 = vsub.f32 %v644, %v486
      %v739 = vsub.f32 %v647, %v487
      %v740 = vsub.f32 %v650, %v488
      %v741 = vsub.f32 %v653, %v489
      %v742 = vsub.f32 %v656, %v490
      %v743 = vsub.f32 %v659, %v491
      %v744 = vsub.f32 %v662, %v492
      %v745 = vsub.f32 %v665, %v493
      %v746 = vsub.f32 %v668, %v494
      %v747 = vsub.f32 %v671, %v495
      %v748 = vsub.f32 %v674, %v496
      %v749 = vsub.f32 %v677, %v497
      %v750 = vsub.f32 %v680, %v498
      %v751 = vsub.f32 %v683, %v499
      %v752 = vsub.f32 %v686, %v500
      %v753 = vsub.f32 %v689, %v501
      %v754 = vsub.f32 %v692, %v502
      %v755 = vsub.f32 %v695, %v503
      %v756 = vsub.f32 %v698, %v504
      %v757 = vsub.f32 %v701, %v505
      %v758 = vsub.f32 %v704, %v506
      %v759 = vsub.f32 %v707, %v507
      %v760 = vsub.f32 %v710, %v508
      %v761 = vsub.f32 %v713, %v509
      %v762 = vlaneseq
      %v763 = vshrl.u32 %v762, 7
      %vm764 = vcmp.eq.s32.totalorder %v763, %v511
      %v765 = vsel %vm764, 1, 0
      %v766 = vcvt.s32.f32 %v765
      %v791 = vlaneseq
      %v792 = vshrl.u32 %v791, 7
      %v793 = vsub.s32 %v511, %v792
      %v794 = vrot.slane %v714, %v793
      %v795 = vlaneseq
      %v796 = vshrl.u32 %v795, 7
      %v797 = vsub.s32 %v511, %v796
      %v798 = vrot.slane %v715, %v797
      %v799 = vlaneseq
      %v800 = vshrl.u32 %v799, 7
      %v801 = vsub.s32 %v511, %v800
      %v802 = vrot.slane %v716, %v801
      %v803 = vlaneseq
      %v804 = vshrl.u32 %v803, 7
      %v805 = vsub.s32 %v511, %v804
      %v806 = vrot.slane %v717, %v805
      %v807 = vlaneseq
      %v808 = vshrl.u32 %v807, 7
      %v809 = vsub.s32 %v511, %v808
      %v810 = vrot.slane %v718, %v809
      %v811 = vlaneseq
      %v812 = vshrl.u32 %v811, 7
      %v813 = vsub.s32 %v511, %v812
      %v814 = vrot.slane %v719, %v813
      %v815 = vlaneseq
      %v816 = vshrl.u32 %v815, 7
      %v817 = vsub.s32 %v511, %v816
      %v818 = vrot.slane %v720, %v817
      %v819 = vlaneseq
      %v820 = vshrl.u32 %v819, 7
      %v821 = vsub.s32 %v511, %v820
      %v822 = vrot.slane %v721, %v821
      %v823 = vlaneseq
      %v824 = vshrl.u32 %v823, 7
      %v825 = vsub.s32 %v511, %v824
      %v826 = vrot.slane %v722, %v825
      %v827 = vlaneseq
      %v828 = vshrl.u32 %v827, 7
      %v829 = vsub.s32 %v511, %v828
      %v830 = vrot.slane %v723, %v829
      %v831 = vlaneseq
      %v832 = vshrl.u32 %v831, 7
      %v833 = vsub.s32 %v511, %v832
      %v834 = vrot.slane %v724, %v833
      %v835 = vlaneseq
      %v836 = vshrl.u32 %v835, 7
      %v837 = vsub.s32 %v511, %v836
      %v838 = vrot.slane %v725, %v837
      %v839 = vlaneseq
      %v840 = vshrl.u32 %v839, 7
      %v841 = vsub.s32 %v511, %v840
      %v842 = vrot.slane %v726, %v841
      %v843 = vlaneseq
      %v844 = vshrl.u32 %v843, 7
      %v845 = vsub.s32 %v511, %v844
      %v846 = vrot.slane %v727, %v845
      %v847 = vlaneseq
      %v848 = vshrl.u32 %v847, 7
      %v849 = vsub.s32 %v511, %v848
      %v850 = vrot.slane %v728, %v849
      %v851 = vlaneseq
      %v852 = vshrl.u32 %v851, 7
      %v853 = vsub.s32 %v511, %v852
      %v854 = vrot.slane %v729, %v853
      %v855 = vlaneseq
      %v856 = vshrl.u32 %v855, 7
      %v857 = vsub.s32 %v511, %v856
      %v858 = vrot.slane %v730, %v857
      %v859 = vlaneseq
      %v860 = vshrl.u32 %v859, 7
      %v861 = vsub.s32 %v511, %v860
      %v862 = vrot.slane %v731, %v861
      %v863 = vlaneseq
      %v864 = vshrl.u32 %v863, 7
      %v865 = vsub.s32 %v511, %v864
      %v866 = vrot.slane %v732, %v865
      %v867 = vlaneseq
      %v868 = vshrl.u32 %v867, 7
      %v869 = vsub.s32 %v511, %v868
      %v870 = vrot.slane %v733, %v869
      %v871 = vlaneseq
      %v872 = vshrl.u32 %v871, 7
      %v873 = vsub.s32 %v511, %v872
      %v874 = vrot.slane %v734, %v873
      %v875 = vlaneseq
      %v876 = vshrl.u32 %v875, 7
      %v877 = vsub.s32 %v511, %v876
      %v878 = vrot.slane %v735, %v877
      %v879 = vlaneseq
      %v880 = vshrl.u32 %v879, 7
      %v881 = vsub.s32 %v511, %v880
      %v882 = vrot.slane %v736, %v881
      %v883 = vlaneseq
      %v884 = vshrl.u32 %v883, 7
      %v885 = vsub.s32 %v511, %v884
      %v886 = vrot.slane %v737, %v885
      %vm887 = vcmask 1041409
      %v888 = vsel %vm887, %v798, %v794
      %vm889 = vcmask 1042434
      %v890 = vsel %vm889, %v802, %v888
      %vm891 = vcmask 1043459
      %v892 = vsel %vm891, %v806, %v890
      %vm893 = vcmask 1044484
      %v894 = vsel %vm893, %v810, %v892
      %vm895 = vcmask 1045509
      %v896 = vsel %vm895, %v814, %v894
      %vm897 = vcmask 1046534
      %v898 = vsel %vm897, %v818, %v896
      %vm899 = vcmask 1047559
      %v900 = vsel %vm899, %v822, %v898
      %v901 = vsel %vm887, %v830, %v826
      %v902 = vsel %vm889, %v834, %v901
      %v903 = vsel %vm891, %v838, %v902
      %v904 = vsel %vm893, %v842, %v903
      %v905 = vsel %vm895, %v846, %v904
      %v906 = vsel %vm897, %v850, %v905
      %v907 = vsel %vm899, %v854, %v906
      %v908 = vsel %vm887, %v862, %v858
      %v909 = vsel %vm889, %v866, %v908
      %v910 = vsel %vm891, %v870, %v909
      %v911 = vsel %vm893, %v874, %v910
      %v912 = vsel %vm895, %v878, %v911
      %v913 = vsel %vm897, %v882, %v912
      %v914 = vsel %vm899, %v886, %v913
      %vm915 = vcmask 39936
      %v916 = vsel %vm915, %v900, 0
      %v918 = vsel %vm915, %v907, 0
      %v920 = vsel %vm915, %v914, 0
      %vm922 = vcmask 1044480
      %v924 = vsel %vm922, %v766, 0
      %926 = vmatprep.subr.mxu0 0.0
      %927 = vmatpush1.msra.mxu0 0.0
      %928 = vmatprep.subr.mxu0 0.0
      %929 = vmatpush1.msra.mxu0 0.0
      %930 = vmatprep.subr.mxu0 0.0
      %931 = vmatpush1.msra.mxu0 0.0
      %932 = vmatprep.subr.mxu0 0.0
      %933 = vmatpush1.msra.mxu0 0.0
      %934 = vmatprep.subr.mxu0 0.0
      %935 = vmatpush1.msra.mxu0 0.0
      %936 = vmatprep.subr.mxu0 0.0
      %937 = vmatpush1.msra.mxu0 0.0
      %938 = vmatprep.subr.mxu0 0.0
      %939 = vmatpush1.msra.mxu0 0.0
      %940 = vmatprep.subr.mxu0 0.0
      %941 = vmatpush1.msra.mxu0 0.0
      %942 = vmatprep.subr.mxu0 0.0
      %943 = vmatpush1.msra.mxu0 0.0
      %944 = vmatprep.subr.mxu0 0.0
      %945 = vmatpush1.msra.mxu0 0.0
      %946 = vmatprep.subr.mxu0 0.0
      %947 = vmatpush1.msra.mxu0 0.0
      %948 = vmatprep.subr.mxu0 0.0
      %949 = vmatpush1.msra.mxu0 0.0
      %950 = vmatprep.subr.mxu0 0.0
      %951 = vmatpush1.msra.mxu0 0.0
      %952 = vmatprep.subr.mxu0 0.0
      %953 = vmatpush1.msra.mxu0 0.0
      %954 = vmatprep.subr.mxu0 0.0
      %955 = vmatpush1.msra.mxu0 0.0
      %956 = vmatprep.subr.mxu0 0.0
      %957 = vmatpush1.msra.mxu0 %v924
      %958 = vmatprep.subr.mxu0 0.0
      %959 = vmatpush2.msra.mxu0 0.0
      %960 = vmatprep.subr.mxu0 0.0
      %961 = vmatpush2.msra.mxu0 0.0
      %962 = vmatprep.subr.mxu0 0.0
      %963 = vmatpush2.msra.mxu0 0.0
      %964 = vmatprep.subr.mxu0 0.0
      %965 = vmatpush2.msra.mxu0 0.0
      %966 = vmatprep.subr.mxu0 0.0
      %967 = vmatpush2.msra.mxu0 0.0
      %968 = vmatprep.subr.mxu0 0.0
      %969 = vmatpush2.msra.mxu0 0.0
      %970 = vmatprep.subr.mxu0 0.0
      %971 = vmatpush2.msra.mxu0 0.0
      %972 = vmatprep.subr.mxu0 0.0
      %973 = vmatpush2.msra.mxu0 0.0
      %974 = vmatprep.subr.mxu0 0.0
      %975 = vmatpush2.msra.mxu0 0.0
      %976 = vmatprep.subr.mxu0 0.0
      %977 = vmatpush2.msra.mxu0 0.0
      %978 = vmatprep.subr.mxu0 0.0
      %979 = vmatpush2.msra.mxu0 0.0
      %980 = vmatprep.subr.mxu0 0.0
      %981 = vmatpush2.msra.mxu0 0.0
      %982 = vmatprep.subr.mxu0 0.0
      %983 = vmatpush2.msra.mxu0 0.0
      %984 = vmatprep.subr.mxu0 0.0
      %985 = vmatpush2.msra.mxu0 0.0
      %986 = vmatprep.subr.mxu0 0.0
      %987 = vmatpush2.msra.mxu0 0.0
      %988 = vmatprep.subr.mxu0 0.0
      %989 = vmatpush2.msra.mxu0 0.0
      %990 = vmatprep.mubr.f32.mxu0 0.0
      %991 = vmatmul.mubr.f32.gmra.mxu0 %v916
      %v992 = vpop.f32.mrf.mxu0
      %v993 = vadd.f32 0.0, %v992
      %v994 = vpop.f32.mrf.mxu0
      %995 = vmatprep.mubr.f32.mxu0 0.0
      %996 = vmatmul.mubr.f32.gmra.mxu0 %v918
      %v997 = vpop.f32.mrf.mxu0
      %v998 = vadd.f32 0.0, %v997
      %v999 = vpop.f32.mrf.mxu0
      %1000 = vmatprep.mubr.f32.mxu0 0.0
      %1001 = vmatmul.mubr.f32.gmra.mxu0 %v920
      %v1002 = vpop.f32.mrf.mxu0
      %v1003 = vadd.f32 0.0, %v1002
      %v1004 = vpop.f32.mrf.mxu0
      %1005 = vdwg.mxu0
      %v1030 = vlaneseq
      %v1031 = vshrl.u32 %v1030, 7
      %v1032 = vsub.s32 %v511, %v1031
      %v1033 = vrot.slane %v738, %v1032
      %v1034 = vlaneseq
      %v1035 = vshrl.u32 %v1034, 7
      %v1036 = vsub.s32 %v511, %v1035
      %v1037 = vrot.slane %v739, %v1036
      %v1038 = vlaneseq
      %v1039 = vshrl.u32 %v1038, 7
      %v1040 = vsub.s32 %v511, %v1039
      %v1041 = vrot.slane %v740, %v1040
      %v1042 = vlaneseq
      %v1043 = vshrl.u32 %v1042, 7
      %v1044 = vsub.s32 %v511, %v1043
      %v1045 = vrot.slane %v741, %v1044
      %v1046 = vlaneseq
      %v1047 = vshrl.u32 %v1046, 7
      %v1048 = vsub.s32 %v511, %v1047
      %v1049 = vrot.slane %v742, %v1048
      %v1050 = vlaneseq
      %v1051 = vshrl.u32 %v1050, 7
      %v1052 = vsub.s32 %v511, %v1051
      %v1053 = vrot.slane %v743, %v1052
      %v1054 = vlaneseq
      %v1055 = vshrl.u32 %v1054, 7
      %v1056 = vsub.s32 %v511, %v1055
      %v1057 = vrot.slane %v744, %v1056
      %v1058 = vlaneseq
      %v1059 = vshrl.u32 %v1058, 7
      %v1060 = vsub.s32 %v511, %v1059
      %v1061 = vrot.slane %v745, %v1060
      %v1062 = vlaneseq
      %v1063 = vshrl.u32 %v1062, 7
      %v1064 = vsub.s32 %v511, %v1063
      %v1065 = vrot.slane %v746, %v1064
      %v1066 = vlaneseq
      %v1067 = vshrl.u32 %v1066, 7
      %v1068 = vsub.s32 %v511, %v1067
      %v1069 = vrot.slane %v747, %v1068
      %v1070 = vlaneseq
      %v1071 = vshrl.u32 %v1070, 7
      %v1072 = vsub.s32 %v511, %v1071
      %v1073 = vrot.slane %v748, %v1072
      %v1074 = vlaneseq
      %v1075 = vshrl.u32 %v1074, 7
      %v1076 = vsub.s32 %v511, %v1075
      %v1077 = vrot.slane %v749, %v1076
      %v1078 = vlaneseq
      %v1079 = vshrl.u32 %v1078, 7
      %v1080 = vsub.s32 %v511, %v1079
      %v1081 = vrot.slane %v750, %v1080
      %v1082 = vlaneseq
      %v1083 = vshrl.u32 %v1082, 7
      %v1084 = vsub.s32 %v511, %v1083
      %v1085 = vrot.slane %v751, %v1084
      %v1086 = vlaneseq
      %v1087 = vshrl.u32 %v1086, 7
      %v1088 = vsub.s32 %v511, %v1087
      %v1089 = vrot.slane %v752, %v1088
      %v1090 = vlaneseq
      %v1091 = vshrl.u32 %v1090, 7
      %v1092 = vsub.s32 %v511, %v1091
      %v1093 = vrot.slane %v753, %v1092
      %v1094 = vlaneseq
      %v1095 = vshrl.u32 %v1094, 7
      %v1096 = vsub.s32 %v511, %v1095
      %v1097 = vrot.slane %v754, %v1096
      %v1098 = vlaneseq
      %v1099 = vshrl.u32 %v1098, 7
      %v1100 = vsub.s32 %v511, %v1099
      %v1101 = vrot.slane %v755, %v1100
      %v1102 = vlaneseq
      %v1103 = vshrl.u32 %v1102, 7
      %v1104 = vsub.s32 %v511, %v1103
      %v1105 = vrot.slane %v756, %v1104
      %v1106 = vlaneseq
      %v1107 = vshrl.u32 %v1106, 7
      %v1108 = vsub.s32 %v511, %v1107
      %v1109 = vrot.slane %v757, %v1108
      %v1110 = vlaneseq
      %v1111 = vshrl.u32 %v1110, 7
      %v1112 = vsub.s32 %v511, %v1111
      %v1113 = vrot.slane %v758, %v1112
      %v1114 = vlaneseq
      %v1115 = vshrl.u32 %v1114, 7
      %v1116 = vsub.s32 %v511, %v1115
      %v1117 = vrot.slane %v759, %v1116
      %v1118 = vlaneseq
      %v1119 = vshrl.u32 %v1118, 7
      %v1120 = vsub.s32 %v511, %v1119
      %v1121 = vrot.slane %v760, %v1120
      %v1122 = vlaneseq
      %v1123 = vshrl.u32 %v1122, 7
      %v1124 = vsub.s32 %v511, %v1123
      %v1125 = vrot.slane %v761, %v1124
      %v1126 = vsel %vm887, %v1037, %v1033
      %v1127 = vsel %vm889, %v1041, %v1126
      %v1128 = vsel %vm891, %v1045, %v1127
      %v1129 = vsel %vm893, %v1049, %v1128
      %v1130 = vsel %vm895, %v1053, %v1129
      %v1131 = vsel %vm897, %v1057, %v1130
      %v1132 = vsel %vm899, %v1061, %v1131
      %v1133 = vsel %vm887, %v1069, %v1065
      %v1134 = vsel %vm889, %v1073, %v1133
      %v1135 = vsel %vm891, %v1077, %v1134
      %v1136 = vsel %vm893, %v1081, %v1135
      %v1137 = vsel %vm895, %v1085, %v1136
      %v1138 = vsel %vm897, %v1089, %v1137
      %v1139 = vsel %vm899, %v1093, %v1138
      %v1140 = vsel %vm887, %v1101, %v1097
      %v1141 = vsel %vm889, %v1105, %v1140
      %v1142 = vsel %vm891, %v1109, %v1141
      %v1143 = vsel %vm893, %v1113, %v1142
      %v1144 = vsel %vm895, %v1117, %v1143
      %v1145 = vsel %vm897, %v1121, %v1144
      %v1146 = vsel %vm899, %v1125, %v1145
      %v1147 = vsel %vm915, %v1132, 0
      %v1149 = vsel %vm915, %v1139, 0
      %v1151 = vsel %vm915, %v1146, 0
      %1153 = vmatprep.subr.mxu0 0.0
      %1154 = vmatpush1.msra.mxu0 0.0
      %1155 = vmatprep.subr.mxu0 0.0
      %1156 = vmatpush1.msra.mxu0 0.0
      %1157 = vmatprep.subr.mxu0 0.0
      %1158 = vmatpush1.msra.mxu0 0.0
      %1159 = vmatprep.subr.mxu0 0.0
      %1160 = vmatpush1.msra.mxu0 0.0
      %1161 = vmatprep.subr.mxu0 0.0
      %1162 = vmatpush1.msra.mxu0 0.0
      %1163 = vmatprep.subr.mxu0 0.0
      %1164 = vmatpush1.msra.mxu0 0.0
      %1165 = vmatprep.subr.mxu0 0.0
      %1166 = vmatpush1.msra.mxu0 0.0
      %1167 = vmatprep.subr.mxu0 0.0
      %1168 = vmatpush1.msra.mxu0 0.0
      %1169 = vmatprep.subr.mxu0 0.0
      %1170 = vmatpush1.msra.mxu0 0.0
      %1171 = vmatprep.subr.mxu0 0.0
      %1172 = vmatpush1.msra.mxu0 0.0
      %1173 = vmatprep.subr.mxu0 0.0
      %1174 = vmatpush1.msra.mxu0 0.0
      %1175 = vmatprep.subr.mxu0 0.0
      %1176 = vmatpush1.msra.mxu0 0.0
      %1177 = vmatprep.subr.mxu0 0.0
      %1178 = vmatpush1.msra.mxu0 0.0
      %1179 = vmatprep.subr.mxu0 0.0
      %1180 = vmatpush1.msra.mxu0 0.0
      %1181 = vmatprep.subr.mxu0 0.0
      %1182 = vmatpush1.msra.mxu0 0.0
      %1183 = vmatprep.subr.mxu0 0.0
      %1184 = vmatpush1.msra.mxu0 %v924
      %1185 = vmatprep.subr.mxu0 0.0
      %1186 = vmatpush2.msra.mxu0 0.0
      %1187 = vmatprep.subr.mxu0 0.0
      %1188 = vmatpush2.msra.mxu0 0.0
      %1189 = vmatprep.subr.mxu0 0.0
      %1190 = vmatpush2.msra.mxu0 0.0
      %1191 = vmatprep.subr.mxu0 0.0
      %1192 = vmatpush2.msra.mxu0 0.0
      %1193 = vmatprep.subr.mxu0 0.0
      %1194 = vmatpush2.msra.mxu0 0.0
      %1195 = vmatprep.subr.mxu0 0.0
      %1196 = vmatpush2.msra.mxu0 0.0
      %1197 = vmatprep.subr.mxu0 0.0
      %1198 = vmatpush2.msra.mxu0 0.0
      %1199 = vmatprep.subr.mxu0 0.0
      %1200 = vmatpush2.msra.mxu0 0.0
      %1201 = vmatprep.subr.mxu0 0.0
      %1202 = vmatpush2.msra.mxu0 0.0
      %1203 = vmatprep.subr.mxu0 0.0
      %1204 = vmatpush2.msra.mxu0 0.0
      %1205 = vmatprep.subr.mxu0 0.0
      %1206 = vmatpush2.msra.mxu0 0.0
      %1207 = vmatprep.subr.mxu0 0.0
      %1208 = vmatpush2.msra.mxu0 0.0
      %1209 = vmatprep.subr.mxu0 0.0
      %1210 = vmatpush2.msra.mxu0 0.0
      %1211 = vmatprep.subr.mxu0 0.0
      %1212 = vmatpush2.msra.mxu0 0.0
      %1213 = vmatprep.subr.mxu0 0.0
      %1214 = vmatpush2.msra.mxu0 0.0
      %1215 = vmatprep.subr.mxu0 0.0
      %1216 = vmatpush2.msra.mxu0 0.0
      %1217 = vmatprep.mubr.f32.mxu0 0.0
      %1218 = vmatmul.mubr.f32.gmra.mxu0 %v1147
      %v1219 = vpop.f32.mrf.mxu0
      %v1220 = vadd.f32 0.0, %v1219
      %v1221 = vpop.f32.mrf.mxu0
      %1222 = vmatprep.mubr.f32.mxu0 0.0
      %1223 = vmatmul.mubr.f32.gmra.mxu0 %v1149
      %v1224 = vpop.f32.mrf.mxu0
      %v1225 = vadd.f32 0.0, %v1224
      %v1226 = vpop.f32.mrf.mxu0
      %1227 = vmatprep.mubr.f32.mxu0 0.0
      %1228 = vmatmul.mubr.f32.gmra.mxu0 %v1151
      %v1229 = vpop.f32.mrf.mxu0
      %v1230 = vadd.f32 0.0, %v1229
      %v1231 = vpop.f32.mrf.mxu0
      %1232 = vdwg.mxu0
      %s1233 = smul.u32 %s30, 24
      %s1234 = scalar_lea.vmem [#allocation2], %s1233
      %1235 = vst [vmem:[%s1234] sm:$0xff] %v993
      %1236 = vst [vmem:[%s1234 + $0x8] sm:$0xff] %v998
      %1237 = vst [vmem:[%s1234 + $0x10] sm:$0xff] %v1003
      %s1238 = scalar_lea.vmem [#allocation3], %s1233
      %1239 = vst [vmem:[%s1238] sm:$0xff] %v1220
      %1240 = vst [vmem:[%s1238 + $0x8] sm:$0xff] %v1225
      %1241 = vst [vmem:[%s1238 + $0x10] sm:$0xff] %v1230
      %p1242 = scmp.eq.s32.totalorder %s30, 0
      // Predicated region
      $region29: #{tpu_custom_call.1} parent=27 // pred_check
        %p1243 = pneg %p1242
      $region30: #{tpu_custom_call.1} parent=27 // pred_check_branch
        %1245 = sbr.rel (%p1243) target = $region32
      $region31: #{tpu_custom_call.1} parent=27 // pred_region
        %s1246 = sld [smem:[#allocation5 + %s29]]
        %p1247 = scmp.gt.s32.totalorder %s1246, 1
        %s1248 = scalar_select %p1247, %s1246, 1
        %p1249 = scmp.lt.s32.totalorder %s1248, 24
        %s1250 = scalar_select %p1249, %s1248, 24
        %s1251 = sld [smem:[#allocation6 + %s29]]
        %s1252 = sadd.s32 %s1251, 1
        %p1253 = scmp.gt.s32.totalorder %s1252, 1
        %s1254 = scalar_select %p1253, %s1252, 1
        %p1255 = scmp.lt.s32.totalorder %s1254, 5
        %s1256 = scalar_select %p1255, %s1254, 5
        %v1257 = vld [vmem:[#allocation3] sm:$0x1]
        %vm1258 = vcmp.ge.s32.totalorder %v511, 1
        %1259 = vrot.lane.b32.xlu0 %v1257, 1
        %v1260 = vpop.permute.xlu0 %1259
        %v1261 = vsel %vm1258, %v1260, 0.0
        %1262 = vrot.lane.b32.xlu0 %v1261, 1
        %v1263 = vpop.permute.xlu0 %1262
        %v1264 = vsel %vm1258, %v1263, 0.0
        %v1265 = vadd.f32 %v1261, %v1264
        %vm1266 = vcmp.ge.s32.totalorder %v511, 2
        %1267 = vrot.lane.b32.xlu0 %v1265, 2
        %v1268 = vpop.permute.xlu0 %1267
        %v1269 = vsel %vm1266, %v1268, 0.0
        %v1270 = vadd.f32 %v1265, %v1269
        %vm1271 = vcmp.ge.s32.totalorder %v511, 4
        %1272 = vrot.lane.b32.xlu0 %v1270, 4
        %v1273 = vpop.permute.xlu0 %1272
        %v1274 = vsel %vm1271, %v1273, 0.0
        %v1275 = vadd.f32 %v1270, %v1274
        // While loop
        $region33: #{tpu_custom_call.1} parent=31 // loop_pre_header
          _
        $region34: #{tpu_custom_call.1} parent=31 // loop_header
          %s1277 = sphi 1, %s1279
          %p1278 = scmp.ge.s32.totalorder %s1277, %s1250
          %v1282 = vphi %v1275, %v1368
        $region35: #{tpu_custom_call.1} parent=31 // loop_header_branch
          %1281 = sbr.rel (%p1278) target = $region39
        $region36: #{tpu_custom_call.1} parent=31 // loop_body
          %s1283 = ssub.s32 %s1277, 1
          %s1284 = scalar_lea.vmem [#allocation2], %s1283
          %v1285 = vld [vmem:[%s1284] sm:$0x1]
          %s1286 = scalar_lea.vmem [#allocation3], %s1277
          %v1287 = vld [vmem:[%s1286] sm:$0x1]
          %v1288 = vadd.f32 %v1282, %v1285
          %1289 = vrot.lane.b32.xlu0 %v1287, 1
          %v1290 = vpop.permute.xlu0 %1289
          %v1291 = vsel %vm1258, %v1290, -1e+30
          %1292 = vrot.lane.b32.xlu0 %v1288, 1
          %v1293 = vpop.permute.xlu0 %1292
          %v1294 = vadd.f32 %v1291, %v1293
          %v1295 = vmax.f32 %v1294, %v1288
          %v1296 = vsub.f32 %v1294, %v1288
          %vm1297 = vcmp.ne.f32.partialorder %v1296, %v1296
          %v1298 = vadd.f32 %v1294, %v1288
          %v1299 = vand.u32 2147483647, %v1296
          %v1300 = vsub.f32 0.0, %v1299
          %v1301 = vmul.f32 %v1300, 1.442695
          %v1302 = vpow.pop %v1301
          %v1303 = vadd.f32 %v1302, 1.0
          %v1304 = vlog2.pop %v1303
          %v1305 = vmul.f32 %v1304, 0.6931472
          %v1306 = vmul.f32 -0.5, %v1302
          %v1307 = vadd.f32 %v1306, 1.0
          %v1308 = vmul.f32 %v1307, %v1302
          %v1309 = vand.u32 2147483647, %v1302
          %vm1310 = vcmp.lt.f32.partialorder %v1309, 0.0004427343
          %v1311 = vsel %vm1310, %v1308, %v1305
          %v1312 = vadd.f32 %v1295, %v1311
          %v1313 = vsel %vm1297, %v1298, %v1312
          %v1314 = vsel %vm1258, %v1313, %v1288
          %1315 = vrot.lane.b32.xlu0 %v1291, 1
          %v1316 = vpop.permute.xlu0 %1315
          %v1317 = vadd.f32 %v1291, %v1316
          %v1318 = vsel %vm1258, %v1317, -1e+30
          %1319 = vrot.lane.b32.xlu0 %v1314, 2
          %v1320 = vpop.permute.xlu0 %1319
          %v1321 = vadd.f32 %v1318, %v1320
          %v1322 = vmax.f32 %v1321, %v1314
          %v1323 = vsub.f32 %v1321, %v1314
          %vm1324 = vcmp.ne.f32.partialorder %v1323, %v1323
          %v1325 = vadd.f32 %v1321, %v1314
          %v1326 = vand.u32 2147483647, %v1323
          %v1327 = vsub.f32 0.0, %v1326
          %v1328 = vmul.f32 %v1327, 1.442695
          %v1329 = vpow.pop %v1328
          %v1330 = vadd.f32 %v1329, 1.0
          %v1331 = vlog2.pop %v1330
          %v1332 = vmul.f32 %v1331, 0.6931472
          %v1333 = vmul.f32 -0.5, %v1329
          %v1334 = vadd.f32 %v1333, 1.0
          %v1335 = vmul.f32 %v1334, %v1329
          %v1336 = vand.u32 2147483647, %v1329
          %vm1337 = vcmp.lt.f32.partialorder %v1336, 0.0004427343
          %v1338 = vsel %vm1337, %v1335, %v1332
          %v1339 = vadd.f32 %v1322, %v1338
          %v1340 = vsel %vm1324, %v1325, %v1339
          %v1341 = vsel %vm1266, %v1340, %v1314
          %1342 = vrot.lane.b32.xlu0 %v1318, 2
          %v1343 = vpop.permute.xlu0 %1342
          %v1344 = vadd.f32 %v1318, %v1343
          %v1345 = vsel %vm1266, %v1344, %v1318
          %1346 = vrot.lane.b32.xlu0 %v1341, 4
          %v1347 = vpop.permute.xlu0 %1346
          %v1348 = vadd.f32 %v1345, %v1347
          %v1349 = vmax.f32 %v1348, %v1341
          %v1350 = vsub.f32 %v1348, %v1341
          %vm1351 = vcmp.ne.f32.partialorder %v1350, %v1350
          %v1352 = vadd.f32 %v1348, %v1341
          %v1353 = vand.u32 2147483647, %v1350
          %v1354 = vsub.f32 0.0, %v1353
          %v1355 = vmul.f32 %v1354, 1.442695
          %v1356 = vpow.pop %v1355
          %v1357 = vadd.f32 %v1356, 1.0
          %v1358 = vlog2.pop %v1357
          %v1359 = vmul.f32 %v1358, 0.6931472
          %v1360 = vmul.f32 -0.5, %v1356
          %v1361 = vadd.f32 %v1360, 1.0
          %v1362 = vmul.f32 %v1361, %v1356
          %v1363 = vand.u32 2147483647, %v1356
          %vm1364 = vcmp.lt.f32.partialorder %v1363, 0.0004427343
          %v1365 = vsel %vm1364, %v1362, %v1359
          %v1366 = vadd.f32 %v1349, %v1365
          %v1367 = vsel %vm1351, %v1352, %v1366
          %v1368 = vsel %vm1271, %v1367, %v1341
        $region37: #{tpu_custom_call.1} parent=31 // loop_footer
          %s1279 = sadd.s32 %s1277, 1
        $region38: #{tpu_custom_call.1} parent=31 // loop_footer_branch
          %1276 = sbr.rel target = $region34
        $region39: #{tpu_custom_call.1} parent=31 // loop_exit
          _
        %s1369 = ssub.s32 %s1250, 1
        %s1370 = scalar_lea.vmem [#allocation2], %s1369
        %v1371 = vld [vmem:[%s1370] sm:$0x1]
        %s1372 = ssub.s32 %s1256, 1
        %v1373 = vstv %s1372
        %vm1374 = vcmp.eq.s32.totalorder %v511, %v1373
        %v1375 = vsel %vm1374, %v1282, 0.0
        %vm1376 = vcmask 1040384
        %v1377 = vsel %vm1376, %v1375, 0.0
        %1378 = vadd.xlane.f32.xlu0 %v1377
        %v1379 = vpop.xlane.xlu0 %1378
        %v1380 = vrot.slane %v1379, 4
        %v1381 = vadd.f32 %v1379, %v1380
        %v1382 = vrot.slane %v1381, 2
        %v1383 = vadd.f32 %v1381, %v1382
        %v1384 = vrot.slane %v1383, 1
        %v1385 = vadd.f32 %v1383, %v1384
        %s1386 = vtos %v1385
        %v1387 = vstv %s1386
        %v1388 = vsel %vm1374, %v1371, 0.0
        %v1389 = vsel %vm1376, %v1388, 0.0
        %1390 = vadd.xlane.f32.xlu0 %v1389
        %v1391 = vpop.xlane.xlu0 %1390
        %v1392 = vrot.slane %v1391, 4
        %v1393 = vadd.f32 %v1391, %v1392
        %v1394 = vrot.slane %v1393, 2
        %v1395 = vadd.f32 %v1393, %v1394
        %v1396 = vrot.slane %v1395, 1
        %v1397 = vadd.f32 %v1395, %v1396
        %s1398 = vtos %v1397
        %v1399 = vstv %s1398
        %v1400 = vadd.f32 %v1387, %v1399
        %v1401 = vmul.f32 %v1400, -1.0
        %vm1402 = vcmask 0
        %1403 = vst.msk [vmem:[%s196] sm:$0x1] %vm1402, %v1401
      $region32: #{tpu_custom_call.1} parent=27 // pred_fallthru
        _
      %p1404 = scmp.lt.s32.totalorder %s29, 1
      %s1405 = scalar_select %p1404, %s29, 1
      %s1406 = scalar_lea.vmem %s4, %s1405
      // Predicated region
      $region40: #{tpu_custom_call.1} parent=27 // pred_check
        %p1407 = pneg %p109
      $region41: #{tpu_custom_call.1} parent=27 // pred_check_branch
        %1409 = sbr.rel (%p1407) target = $region43
      $region42: #{tpu_custom_call.1} parent=27 // pred_region
        _
      $region43: #{tpu_custom_call.1} parent=27 // pred_fallthru
        _
    $region28: #{tpu_custom_call.1} parent=5 // pred_fallthru
      _
    %p1410 = scmp.le.s32.totalorder 2, %s20
    // Predicated region
    $region44: #{tpu_custom_call.1} parent=5 // pred_check
      %p1411 = pneg %p1410
    $region45: #{tpu_custom_call.1} parent=5 // pred_check_branch
      %1413 = sbr.rel (%p1411) target = $region47
    $region46: #{tpu_custom_call.1} parent=5 // pred_region
      %s1414 = ssub.s32 %s20, 2
      // Predicated region
      $region48: #{tpu_custom_call.1} parent=46 // pred_check
        %p1415 = pneg %p115
      $region49: #{tpu_custom_call.1} parent=46 // pred_check_branch
        %1417 = sbr.rel (%p1415) target = $region51
      $region50: #{tpu_custom_call.1} parent=46 // pred_region
        %p1418 = scmp.lt.s32.totalorder %s31, 1
        %s1419 = scalar_select %p1418, %s31, 1
        %s1420 = scalar_lea.vmem %s4, %s1419
      $region51: #{tpu_custom_call.1} parent=46 // pred_fallthru
        _
    $region47: #{tpu_custom_call.1} parent=5 // pred_fallthru
      _
  $region6: #{tpu_custom_call.1} parent=0 // loop_footer
    %s24 = sadd.s32 1, %s20
  $region7: #{tpu_custom_call.1} parent=0 // loop_footer_branch
    %19 = sbr.rel target = $region3
  $region8: #{tpu_custom_call.1} parent=0 // loop_exit
    _

</llo_original>
